<compile_context>
chip_gen: v7x
topology: tpu7x:2x2x1
jax: 0.10.0
libtpu: 0.0.40
codegen_flags: <defaults>
</compile_context>

<pallas_src>
import jax
import jax.numpy as jnp
from jax.experimental import pallas as pl
from jax.experimental.pallas import tpu as pltpu

FEAT_C = 1280          # efficientnet_b1 classifier[1].in_features
H1, H2, OUT = 256, 128, 2
OUT_PAD = 128          # lane-dense fc_out (real outputs live in lanes [:2])
NEG_SLOPE = 0.1        # nn.LeakyReLU(negative_slope=0.1)
DROP_P = 0.3
_KEEP_SCALE = 1.0 / (1.0 - DROP_P)
_DROP_THRESH = int(DROP_P * 2147483648.0)   # p * 2^31 (integer threshold compare)


def _leaky_relu(x):
    return jnp.where(x >= 0, x, NEG_SLOPE * x)


def _keep_mask(shape, seed, tile_id, salt):
    # Counter-based hash PRNG from plain int32 ops (murmur3-style finalizer).
    # Lowers on Mosaic and in interpret mode, unlike pltpu.prng_* in some modes.
    r = jax.lax.broadcasted_iota(jnp.int32, shape, 0)
    c = jax.lax.broadcasted_iota(jnp.int32, shape, 1)
    h = (seed * (-1640531527)        # 0x9E3779B9
         + tile_id * 668265583       # 0x27D4EB2F
         + salt * 374761393          # 0x165667B1
         + r * (-2048144789)         # 0x85EBCA6B
         + c * (-1028477387))        # 0xC2B2AE35
    h = h ^ ((h >> 16) & 0xFFFF)     # logical-shift emulation on int32
    h = h * (-2048144789)
    h = h ^ ((h >> 13) & 0x7FFFF)
    h = h * (-1028477387)
    h = h ^ ((h >> 16) & 0xFFFF)
    u31 = h & 0x7FFFFFFF             # uniform bits in [0, 2^31)
    return u31 >= _DROP_THRESH       # keep with prob (1 - p)


def _dropout(x, seed, tile_id, salt):
    keep = _keep_mask(x.shape, seed, tile_id, salt)
    return jnp.where(keep, x * _KEEP_SCALE, 0.0)   # inverted dropout


def head_kernel(seed_ref, x_ref, w1_ref, b1_ref, w2_ref, b2_ref,
                w3_ref, b3_ref, o_ref):
    seed = seed_ref[0]
    tile = pl.program_id(0)

    x = x_ref[...]                                                # (TB, 1280) bf16

    # fc1 + LeakyReLU + Dropout(0.3)  (MXU accumulates f32, elementwise in f32)
    h = jnp.dot(x, w1_ref[...], preferred_element_type=jnp.float32) + b1_ref[...]
    h = _leaky_relu(h)
    h = _dropout(h, seed, tile, 1)

    # fc2 + LeakyReLU + Dropout(0.3)
    h = jnp.dot(h.astype(w2_ref.dtype), w2_ref[...],
                preferred_element_type=jnp.float32) + b2_ref[...]
    h = _leaky_relu(h)
    h = _dropout(h, seed, tile, 2)

    # fc_out (padded to 128 lanes for a lane-dense store) + tanh (EUP)
    h = jnp.dot(h.astype(w3_ref.dtype), w3_ref[...],
                preferred_element_type=jnp.float32) + b3_ref[...]
    o_ref[...] = jnp.tanh(h)


def camera_control_head(feats_nchw, params, seed):
    """feats_nchw: (B, 1280, H, W) float32 backbone feature map (PyTorch NCHW)."""
    B, C, H, W = feats_nchw.shape
    assert C == FEAT_C

    # AdaptiveAvgPool2d(1) + flatten as a cheap XLA reduction: avoids transposing
    # and DMAing the full feature map (only B*1280 values reach the kernel).
    pooled = jnp.mean(feats_nchw.astype(jnp.float32), axis=(2, 3))   # (B, 1280)

    # Batch tiling: sublane-align, up to 256 rows per grid step.
    B8 = max(8, ((B + 7) // 8) * 8)
    tile_b = min(256, B8)
    B_pad = ((B8 + tile_b - 1) // tile_b) * tile_b
    x = jnp.pad(pooled, ((0, B_pad - B), (0, 0))).astype(jnp.bfloat16)

    w1, b1, w2, b2, w3, b3 = (params[k] for k in ("w1", "b1", "w2", "b2", "w3", "b3"))
    # bf16 weights (halves DMA bytes; MXU-native), f32 biases.
    w1b = w1.astype(jnp.bfloat16)
    w2b = w2.astype(jnp.bfloat16)
    # Pad fc_out to 128 output lanes for a lane-dense store; slice [:, :2] below.
    w3p = jnp.zeros((H2, OUT_PAD), jnp.float32).at[:, :OUT].set(w3).astype(jnp.bfloat16)
    b3p = jnp.zeros((1, OUT_PAD), jnp.float32).at[:, :OUT].set(b3)
    b1 = b1.astype(jnp.float32)
    b2 = b2.astype(jnp.float32)

    seed_arr = jnp.asarray([seed], dtype=jnp.int32)

    out = pl.pallas_call(
        head_kernel,
        out_shape=jax.ShapeDtypeStruct((B_pad, OUT_PAD), jnp.float32),
        grid=(B_pad // tile_b,),
        in_specs=[
            pl.BlockSpec(memory_space=pltpu.MemorySpace.SMEM),        # seed scalar
            pl.BlockSpec((tile_b, FEAT_C), lambda i: (i, 0)),         # pooled feats
            pl.BlockSpec((FEAT_C, H1), lambda i: (0, 0)),             # w1 (resident)
            pl.BlockSpec((1, H1), lambda i: (0, 0)),                  # b1
            pl.BlockSpec((H1, H2), lambda i: (0, 0)),                 # w2
            pl.BlockSpec((1, H2), lambda i: (0, 0)),                  # b2
            pl.BlockSpec((H2, OUT_PAD), lambda i: (0, 0)),            # w3 (lane-padded)
            pl.BlockSpec((1, OUT_PAD), lambda i: (0, 0)),             # b3
        ],
        out_specs=pl.BlockSpec((tile_b, OUT_PAD), lambda i: (i, 0)),
        compiler_params=pltpu.CompilerParams(
            dimension_semantics=("parallel",),                        # v7x: 2 TCs
        ),
    )(seed_arr, x, w1b, b1, w2b, b2, w3p, b3p)

    return out[:B, :OUT]


def _linear_init(kw, kb, fan_in, fan_out):
    # PyTorch nn.Linear default init: U(-1/sqrt(fan_in), 1/sqrt(fan_in))
    bound = 1.0 / (fan_in ** 0.5)
    w = jax.random.uniform(kw, (fan_in, fan_out), minval=-bound, maxval=bound,
                           dtype=jnp.float32)
    b = jax.random.uniform(kb, (1, fan_out), minval=-bound, maxval=bound,
                           dtype=jnp.float32)
    return w, b


if __name__ == "__main__":
    key = jax.random.PRNGKey(0)
    kx, k1, k2, k3, k4, k5, k6 = jax.random.split(key, 7)

    # Small, module-consistent shapes: batch=2, EfficientNet-B1 feature
    # channels=1280, small 4x4 spatial feature map.
    B, Hs, Ws = 2, 4, 4
    feats = jax.random.normal(kx, (B, FEAT_C, Hs, Ws), dtype=jnp.float32)

    w1, b1 = _linear_init(k1, k2, FEAT_C, H1)   # fc1: 1280 -> 256
    w2, b2 = _linear_init(k3, k4, H1, H2)       # fc2: 256  -> 128
    w3, b3 = _linear_init(k5, k6, H2, OUT)      # fc_out: 128 -> 2
    params = dict(w1=w1, b1=b1, w2=w2, b2=b2, w3=w3, b3=b3)

    out = camera_control_head(feats, params, seed=0)
    out = jax.block_until_ready(out)
    assert out.shape == (B, OUT)
    assert bool(jnp.all(jnp.abs(out) <= 1.0))   # tanh range sanity check
    print("KERNEL_OK")
</pallas_src>

<mosaic_0001>
module attributes {stable_mosaic.version = 11 : i64} {
  func.func @head_kernel(%arg0: i32, %arg1: memref<1xi32, #tpu.memory_space<smem>>, %arg2: memref<8x1280xbf16, #tpu.memory_space<vmem>>, %arg3: memref<1280x256xbf16, #tpu.memory_space<vmem>>, %arg4: memref<1x256xf32, #tpu.memory_space<vmem>>, %arg5: memref<256x128xbf16, #tpu.memory_space<vmem>>, %arg6: memref<1x128xf32, #tpu.memory_space<vmem>>, %arg7: memref<128x128xbf16, #tpu.memory_space<vmem>>, %arg8: memref<1x128xf32, #tpu.memory_space<vmem>>, %arg9: memref<8x128xf32, #tpu.memory_space<vmem>>) attributes {dimension_semantics = [#tpu.dimension_semantics<parallel>], iteration_bounds = array<i64: 1>, scalar_prefetch = 0 : i64, scratch_operands = 0 : i64, tpu.core_type = #tpu.core_type<tc>, window_params = [{transform_indices = @transform_0, window_bounds = array<i64: 1>}, {transform_indices = @transform_1, window_bounds = array<i64: 8, 1280>}, {pipeline_mode = #tpu.pipeline_mode<synchronous>, transform_indices = @transform_2, window_bounds = array<i64: 1280, 256>}, {pipeline_mode = #tpu.pipeline_mode<synchronous>, transform_indices = @transform_3, window_bounds = array<i64: 1, 256>}, {pipeline_mode = #tpu.pipeline_mode<synchronous>, transform_indices = @transform_4, window_bounds = array<i64: 256, 128>}, {pipeline_mode = #tpu.pipeline_mode<synchronous>, transform_indices = @transform_5, window_bounds = array<i64: 1, 128>}, {pipeline_mode = #tpu.pipeline_mode<synchronous>, transform_indices = @transform_6, window_bounds = array<i64: 128, 128>}, {pipeline_mode = #tpu.pipeline_mode<synchronous>, transform_indices = @transform_7, window_bounds = array<i64: 1, 128>}, {transform_indices = @transform_8, window_bounds = array<i64: 8, 128>}]} {
    %c0 = arith.constant 0 : index
    %0 = memref.load %arg1[%c0] : memref<1xi32, #tpu.memory_space<smem>>
    %c0_0 = arith.constant 0 : index
    %c0_1 = arith.constant 0 : index
    %1 = vector.load %arg2[%c0_0, %c0_1] : memref<8x1280xbf16, #tpu.memory_space<vmem>>, vector<8x1280xbf16>
    %c0_2 = arith.constant 0 : index
    %c0_3 = arith.constant 0 : index
    %2 = vector.load %arg3[%c0_2, %c0_3] : memref<1280x256xbf16, #tpu.memory_space<vmem>>, vector<1280x256xbf16>
    %cst = arith.constant dense<0.000000e+00> : vector<8x256xf32>
    %3 = tpu.matmul %1, %2, %cst {dimension_numbers = #tpu.dot_dimension_numbers<[1], [0], [0], [1], [0, 0, 1, 1], [], []>} : vector<8x1280xbf16>, vector<1280x256xbf16>, vector<8x256xf32> -> vector<8x256xf32>
    %c0_4 = arith.constant 0 : index
    %c0_5 = arith.constant 0 : index
    %4 = vector.load %arg4[%c0_4, %c0_5] : memref<1x256xf32, #tpu.memory_space<vmem>>, vector<1x256xf32>
    %5 = vector.broadcast %4 : vector<1x256xf32> to vector<8x256xf32>
    %6 = arith.addf %3, %5 : vector<8x256xf32>
    %cst_6 = arith.constant 0.000000e+00 : f32
    %7 = vector.broadcast %cst_6 : f32 to vector<8x256xf32>
    %8 = arith.cmpf oge, %6, %7 : vector<8x256xf32>
    %cst_7 = arith.constant 1.000000e-01 : f32
    %9 = vector.broadcast %cst_7 : f32 to vector<8x256xf32>
    %10 = arith.mulf %9, %6 : vector<8x256xf32>
    %11 = arith.select %8, %6, %10 : vector<8x256xi1>, vector<8x256xf32>
    %12 = tpu.iota {dimensions = array<i32: 0>} : vector<8x256xi32>
    %13 = tpu.iota {dimensions = array<i32: 1>} : vector<8x256xi32>
    %c-1640531527_i32 = arith.constant -1640531527 : i32
    %14 = arith.muli %0, %c-1640531527_i32 : i32
    %c668265583_i32 = arith.constant 668265583 : i32
    %15 = arith.muli %arg0, %c668265583_i32 : i32
    %16 = arith.addi %14, %15 : i32
    %c374761393_i32 = arith.constant 374761393 : i32
    %17 = arith.addi %16, %c374761393_i32 : i32
    %c-2048144789_i32 = arith.constant -2048144789 : i32
    %18 = vector.broadcast %c-2048144789_i32 : i32 to vector<8x256xi32>
    %19 = arith.muli %12, %18 : vector<8x256xi32>
    %20 = vector.broadcast %17 : i32 to vector<8x256xi32>
    %21 = arith.addi %20, %19 : vector<8x256xi32>
    %c-1028477387_i32 = arith.constant -1028477387 : i32
    %22 = vector.broadcast %c-1028477387_i32 : i32 to vector<8x256xi32>
    %23 = arith.muli %13, %22 : vector<8x256xi32>
    %24 = arith.addi %21, %23 : vector<8x256xi32>
    %c16_i32 = arith.constant 16 : i32
    %25 = vector.broadcast %c16_i32 : i32 to vector<8x256xi32>
    %26 = arith.shrsi %24, %25 : vector<8x256xi32>
    %c65535_i32 = arith.constant 65535 : i32
    %27 = vector.broadcast %c65535_i32 : i32 to vector<8x256xi32>
    %28 = arith.andi %26, %27 : vector<8x256xi32>
    %29 = arith.xori %24, %28 : vector<8x256xi32>
    %c-2048144789_i32_8 = arith.constant -2048144789 : i32
    %30 = vector.broadcast %c-2048144789_i32_8 : i32 to vector<8x256xi32>
    %31 = arith.muli %29, %30 : vector<8x256xi32>
    %c13_i32 = arith.constant 13 : i32
    %32 = vector.broadcast %c13_i32 : i32 to vector<8x256xi32>
    %33 = arith.shrsi %31, %32 : vector<8x256xi32>
    %c524287_i32 = arith.constant 524287 : i32
    %34 = vector.broadcast %c524287_i32 : i32 to vector<8x256xi32>
    %35 = arith.andi %33, %34 : vector<8x256xi32>
    %36 = arith.xori %31, %35 : vector<8x256xi32>
    %c-1028477387_i32_9 = arith.constant -1028477387 : i32
    %37 = vector.broadcast %c-1028477387_i32_9 : i32 to vector<8x256xi32>
    %38 = arith.muli %36, %37 : vector<8x256xi32>
    %c16_i32_10 = arith.constant 16 : i32
    %39 = vector.broadcast %c16_i32_10 : i32 to vector<8x256xi32>
    %40 = arith.shrsi %38, %39 : vector<8x256xi32>
    %c65535_i32_11 = arith.constant 65535 : i32
    %41 = vector.broadcast %c65535_i32_11 : i32 to vector<8x256xi32>
    %42 = arith.andi %40, %41 : vector<8x256xi32>
    %43 = arith.xori %38, %42 : vector<8x256xi32>
    %c2147483647_i32 = arith.constant 2147483647 : i32
    %44 = vector.broadcast %c2147483647_i32 : i32 to vector<8x256xi32>
    %45 = arith.andi %43, %44 : vector<8x256xi32>
    %c644245094_i32 = arith.constant 644245094 : i32
    %46 = vector.broadcast %c644245094_i32 : i32 to vector<8x256xi32>
    %47 = arith.cmpi sge, %45, %46 : vector<8x256xi32>
    %cst_12 = arith.constant 1.42857146 : f32
    %48 = vector.broadcast %cst_12 : f32 to vector<8x256xf32>
    %49 = arith.mulf %11, %48 : vector<8x256xf32>
    %cst_13 = arith.constant 0.000000e+00 : f32
    %50 = vector.broadcast %cst_13 : f32 to vector<8x256xf32>
    %51 = arith.select %47, %49, %50 : vector<8x256xi1>, vector<8x256xf32>
    %52 = arith.truncf %51 : vector<8x256xf32> to vector<8x256xbf16>
    %c0_14 = arith.constant 0 : index
    %c0_15 = arith.constant 0 : index
    %53 = vector.load %arg5[%c0_14, %c0_15] : memref<256x128xbf16, #tpu.memory_space<vmem>>, vector<256x128xbf16>
    %cst_16 = arith.constant dense<0.000000e+00> : vector<8x128xf32>
    %54 = tpu.matmul %52, %53, %cst_16 {dimension_numbers = #tpu.dot_dimension_numbers<[1], [0], [0], [1], [0, 0, 1, 1], [], []>} : vector<8x256xbf16>, vector<256x128xbf16>, vector<8x128xf32> -> vector<8x128xf32>
    %c0_17 = arith.constant 0 : index
    %c0_18 = arith.constant 0 : index
    %55 = vector.load %arg6[%c0_17, %c0_18] : memref<1x128xf32, #tpu.memory_space<vmem>>, vector<1x128xf32>
    %56 = vector.broadcast %55 : vector<1x128xf32> to vector<8x128xf32>
    %57 = arith.addf %54, %56 : vector<8x128xf32>
    %cst_19 = arith.constant 0.000000e+00 : f32
    %58 = vector.broadcast %cst_19 : f32 to vector<8x128xf32>
    %59 = arith.cmpf oge, %57, %58 : vector<8x128xf32>
    %cst_20 = arith.constant 1.000000e-01 : f32
    %60 = vector.broadcast %cst_20 : f32 to vector<8x128xf32>
    %61 = arith.mulf %60, %57 : vector<8x128xf32>
    %62 = arith.select %59, %57, %61 : vector<8x128xi1>, vector<8x128xf32>
    %63 = tpu.iota {dimensions = array<i32: 0>} : vector<8x128xi32>
    %64 = tpu.iota {dimensions = array<i32: 1>} : vector<8x128xi32>
    %c-1640531527_i32_21 = arith.constant -1640531527 : i32
    %65 = arith.muli %0, %c-1640531527_i32_21 : i32
    %c668265583_i32_22 = arith.constant 668265583 : i32
    %66 = arith.muli %arg0, %c668265583_i32_22 : i32
    %67 = arith.addi %65, %66 : i32
    %c749522786_i32 = arith.constant 749522786 : i32
    %68 = arith.addi %67, %c749522786_i32 : i32
    %c-2048144789_i32_23 = arith.constant -2048144789 : i32
    %69 = vector.broadcast %c-2048144789_i32_23 : i32 to vector<8x128xi32>
    %70 = arith.muli %63, %69 : vector<8x128xi32>
    %71 = vector.broadcast %68 : i32 to vector<8x128xi32>
    %72 = arith.addi %71, %70 : vector<8x128xi32>
    %c-1028477387_i32_24 = arith.constant -1028477387 : i32
    %73 = vector.broadcast %c-1028477387_i32_24 : i32 to vector<8x128xi32>
    %74 = arith.muli %64, %73 : vector<8x128xi32>
    %75 = arith.addi %72, %74 : vector<8x128xi32>
    %c16_i32_25 = arith.constant 16 : i32
    %76 = vector.broadcast %c16_i32_25 : i32 to vector<8x128xi32>
    %77 = arith.shrsi %75, %76 : vector<8x128xi32>
    %c65535_i32_26 = arith.constant 65535 : i32
    %78 = vector.broadcast %c65535_i32_26 : i32 to vector<8x128xi32>
    %79 = arith.andi %77, %78 : vector<8x128xi32>
    %80 = arith.xori %75, %79 : vector<8x128xi32>
    %c-2048144789_i32_27 = arith.constant -2048144789 : i32
    %81 = vector.broadcast %c-2048144789_i32_27 : i32 to vector<8x128xi32>
    %82 = arith.muli %80, %81 : vector<8x128xi32>
    %c13_i32_28 = arith.constant 13 : i32
    %83 = vector.broadcast %c13_i32_28 : i32 to vector<8x128xi32>
    %84 = arith.shrsi %82, %83 : vector<8x128xi32>
    %c524287_i32_29 = arith.constant 524287 : i32
    %85 = vector.broadcast %c524287_i32_29 : i32 to vector<8x128xi32>
    %86 = arith.andi %84, %85 : vector<8x128xi32>
    %87 = arith.xori %82, %86 : vector<8x128xi32>
    %c-1028477387_i32_30 = arith.constant -1028477387 : i32
    %88 = vector.broadcast %c-1028477387_i32_30 : i32 to vector<8x128xi32>
    %89 = arith.muli %87, %88 : vector<8x128xi32>
    %c16_i32_31 = arith.constant 16 : i32
    %90 = vector.broadcast %c16_i32_31 : i32 to vector<8x128xi32>
    %91 = arith.shrsi %89, %90 : vector<8x128xi32>
    %c65535_i32_32 = arith.constant 65535 : i32
    %92 = vector.broadcast %c65535_i32_32 : i32 to vector<8x128xi32>
    %93 = arith.andi %91, %92 : vector<8x128xi32>
    %94 = arith.xori %89, %93 : vector<8x128xi32>
    %c2147483647_i32_33 = arith.constant 2147483647 : i32
    %95 = vector.broadcast %c2147483647_i32_33 : i32 to vector<8x128xi32>
    %96 = arith.andi %94, %95 : vector<8x128xi32>
    %c644245094_i32_34 = arith.constant 644245094 : i32
    %97 = vector.broadcast %c644245094_i32_34 : i32 to vector<8x128xi32>
    %98 = arith.cmpi sge, %96, %97 : vector<8x128xi32>
    %cst_35 = arith.constant 1.42857146 : f32
    %99 = vector.broadcast %cst_35 : f32 to vector<8x128xf32>
    %100 = arith.mulf %62, %99 : vector<8x128xf32>
    %cst_36 = arith.constant 0.000000e+00 : f32
    %101 = vector.broadcast %cst_36 : f32 to vector<8x128xf32>
    %102 = arith.select %98, %100, %101 : vector<8x128xi1>, vector<8x128xf32>
    %103 = arith.truncf %102 : vector<8x128xf32> to vector<8x128xbf16>
    %c0_37 = arith.constant 0 : index
    %c0_38 = arith.constant 0 : index
    %104 = vector.load %arg7[%c0_37, %c0_38] : memref<128x128xbf16, #tpu.memory_space<vmem>>, vector<128x128xbf16>
    %cst_39 = arith.constant dense<0.000000e+00> : vector<8x128xf32>
    %105 = tpu.matmul %103, %104, %cst_39 {dimension_numbers = #tpu.dot_dimension_numbers<[1], [0], [0], [1], [0, 0, 1, 1], [], []>} : vector<8x128xbf16>, vector<128x128xbf16>, vector<8x128xf32> -> vector<8x128xf32>
    %c0_40 = arith.constant 0 : index
    %c0_41 = arith.constant 0 : index
    %106 = vector.load %arg8[%c0_40, %c0_41] : memref<1x128xf32, #tpu.memory_space<vmem>>, vector<1x128xf32>
    %107 = vector.broadcast %106 : vector<1x128xf32> to vector<8x128xf32>
    %108 = arith.addf %105, %107 : vector<8x128xf32>
    %109 = math.tanh %108 : vector<8x128xf32>
    %c0_42 = arith.constant 0 : index
    %c0_43 = arith.constant 0 : index
    %110 = vector.load %arg9[%c0_42, %c0_43] : memref<8x128xf32, #tpu.memory_space<vmem>>, vector<8x128xf32>
    tpu.vector_store %arg9[%c0_42, %c0_43], %109 {strides = array<i32>} : memref<8x128xf32, #tpu.memory_space<vmem>>, vector<8x128xf32>,
    return
  }
  func.func @transform_0(%arg0: i32) -> i32 {
    %c0_i32 = arith.constant 0 : i32
    %c0_i32_0 = arith.constant 0 : i32
    return %c0_i32 : i32
  }
  func.func @transform_1(%arg0: i32) -> (i32, i32) {
    %c0_i32 = arith.constant 0 : i32
    %c0_i32_0 = arith.constant 0 : i32
    return %arg0, %c0_i32 : i32, i32
  }
  func.func @transform_2(%arg0: i32) -> (i32, i32) {
    %c0_i32 = arith.constant 0 : i32
    %c0_i32_0 = arith.constant 0 : i32
    %c0_i32_1 = arith.constant 0 : i32
    return %c0_i32, %c0_i32_0 : i32, i32
  }
  func.func @transform_3(%arg0: i32) -> (i32, i32) {
    %c0_i32 = arith.constant 0 : i32
    %c0_i32_0 = arith.constant 0 : i32
    %c0_i32_1 = arith.constant 0 : i32
    return %c0_i32, %c0_i32_0 : i32, i32
  }
  func.func @transform_4(%arg0: i32) -> (i32, i32) {
    %c0_i32 = arith.constant 0 : i32
    %c0_i32_0 = arith.constant 0 : i32
    %c0_i32_1 = arith.constant 0 : i32
    return %c0_i32, %c0_i32_0 : i32, i32
  }
  func.func @transform_5(%arg0: i32) -> (i32, i32) {
    %c0_i32 = arith.constant 0 : i32
    %c0_i32_0 = arith.constant 0 : i32
    %c0_i32_1 = arith.constant 0 : i32
    return %c0_i32, %c0_i32_0 : i32, i32
  }
  func.func @transform_6(%arg0: i32) -> (i32, i32) {
    %c0_i32 = arith.constant 0 : i32
    %c0_i32_0 = arith.constant 0 : i32
    %c0_i32_1 = arith.constant 0 : i32
    return %c0_i32, %c0_i32_0 : i32, i32
  }
  func.func @transform_7(%arg0: i32) -> (i32, i32) {
    %c0_i32 = arith.constant 0 : i32
    %c0_i32_0 = arith.constant 0 : i32
    %c0_i32_1 = arith.constant 0 : i32
    return %c0_i32, %c0_i32_0 : i32, i32
  }
  func.func @transform_8(%arg0: i32) -> (i32, i32) {
    %c0_i32 = arith.constant 0 : i32
    %c0_i32_0 = arith.constant 0 : i32
    return %arg0, %c0_i32 : i32, i32
  }
}

</mosaic_0001>

<llo_original>
// kernel: tpu_custom_call.1
$region0: #{tpu_custom_call.1}
  #allocation0 [shape = 'u32[]', space=smem, size = 0x4, offset = 0x4, fixed_abs, tag = 'smem constant byte address 0x4 - core index']
  #allocation1 [shape = 'u32[144,128]{1,0:T(1,128)}', space=vmem, size = 0x12000, scoped, tag = 'internal scratch']
  #allocation2 [shape = 's32[1]{0:T(128)S(6)}', space=smem, size = 0x200, scoped, tag = 'scoped memory for tpu_custom_call.1']
  %s0 = inlined_call_operand.<no memory space> [shape: s32[1], index: 0, kind: input, shape index: {}]
  %s1 = inlined_call_operand.hbm [shape: bf16[8,1280], index: 1, kind: input, shape index: {}]
  %s2 = inlined_call_operand.hbm [shape: bf16[1280,256], index: 2, kind: input, shape index: {}]
  %s3 = inlined_call_operand.vmem [shape: f32[1,256], index: 3, kind: input, shape index: {}]
  %s4 = inlined_call_operand.hbm [shape: bf16[256,128], index: 4, kind: input, shape index: {}]
  %s5 = inlined_call_operand.vmem [shape: f32[1,128], index: 5, kind: input, shape index: {}]
  %s6 = inlined_call_operand.hbm [shape: bf16[128,128], index: 6, kind: input, shape index: {}]
  %s7 = inlined_call_operand.vmem [shape: f32[1,128], index: 7, kind: input, shape index: {}]
  %s8 = inlined_call_operand.hbm [shape: f32[8,128], index: 8, kind: output, shape index: {}]
  %s9 = sld [smem:[#allocation0]]
  $region58: #{tpu_custom_call.1} parent=0
    _
  %s11 = ssub.s32 1, %s9
  %s12 = scalar_select 0, %s11, %s9
  %13 = sst [smem:[#allocation2]] %s0
  $region1: #{tpu_custom_call.1} parent=0
    #allocation3 [shape = 'u8[20480]{0}', space=vmem, size = 0x5000, scoped, tag = 'input window, operand 1, single buffered']
    #allocation4 [shape = 's32[1]{0}', space=sflag, size = 0x4, scoped, tag = 'scoped memory for tpu_custom_call.1']
    #allocation5 [shape = 's32[1]{0}', space=sflag, size = 0x4, scoped, tag = 'scoped memory for tpu_custom_call.1']
    #allocation6 [shape = 'u8[655360]{0}', space=vmem, size = 0xa0000, scoped, tag = 'input window, operand 2, single buffered']
    #allocation7 [shape = 's32[1]{0}', space=sflag, size = 0x4, scoped, tag = 'scoped memory for tpu_custom_call.1']
    #allocation8 [shape = 'u8[65536]{0}', space=vmem, size = 0x10000, scoped, tag = 'input window, operand 4, single buffered']
    #allocation9 [shape = 'u8[32768]{0}', space=vmem, size = 0x8000, scoped, tag = 'input window, operand 6, single buffered']
    #allocation10 [shape = 's32[1]{0}', space=sflag, size = 0x4, scoped, tag = 'scoped memory for tpu_custom_call.1']
    #allocation11 [shape = 'u8[4096]{0}', space=vmem, size = 0x1000, scoped, tag = 'output window, operand 0, single buffered']
    %14 = vsyncpa [#allocation4], 0
    %15 = vsyncpa [#allocation7], 0
    %16 = vsyncpa [#allocation10], 0
    %17 = vsyncpa [#allocation5], 0
    // Predicated region
    $region2: #{tpu_custom_call.1} parent=1 // pred_check
      _
    $region3: #{tpu_custom_call.1} parent=1 // pred_check_branch
      %19 = sbr.rel (0) target = $region5
    $region4: #{tpu_custom_call.1} parent=1 // pred_region
      _
    $region5: #{tpu_custom_call.1} parent=1 // pred_fallthru
      _
    // Predicated region
    $region6: #{tpu_custom_call.1} parent=1 // pred_check
      _
    $region7: #{tpu_custom_call.1} parent=1 // pred_check_branch
      %21 = sbr.rel (0) target = $region9
    $region8: #{tpu_custom_call.1} parent=1 // pred_region
      %s23 = ssub.s32 640, 640
      %24 = vsyncadd [#allocation4], %s23
      %s26 = sshll.u32 [#allocation3], 4
      %s27 = int_to_ptr.vmem [resolvable:$true] %s26
      %29 = dma.hbm_to_vmem [thread:$0]  %s1, 640, %s27, [#allocation4]
    $region9: #{tpu_custom_call.1} parent=1 // pred_fallthru
      _
    // Predicated region
    $region10: #{tpu_custom_call.1} parent=1 // pred_check
      _
    $region11: #{tpu_custom_call.1} parent=1 // pred_check_branch
      %31 = sbr.rel (0) target = $region13
    $region12: #{tpu_custom_call.1} parent=1 // pred_region
      %s33 = ssub.s32 20480, 20480
      %34 = vsyncadd [#allocation7], %s33
      %s35 = sshll.u32 [#allocation6], 4
      %s36 = int_to_ptr.vmem [resolvable:$true] %s35
      %41 = dma.hbm_to_vmem [thread:$0]  %s2, 20480, %s36, [#allocation7], 128, 128, 8
    $region13: #{tpu_custom_call.1} parent=1 // pred_fallthru
      _
    // Predicated region
    $region14: #{tpu_custom_call.1} parent=1 // pred_check
      _
    $region15: #{tpu_custom_call.1} parent=1 // pred_check_branch
      %43 = sbr.rel (0) target = $region17
    $region16: #{tpu_custom_call.1} parent=1 // pred_region
      _
    $region17: #{tpu_custom_call.1} parent=1 // pred_fallthru
      _
    // Predicated region
    $region18: #{tpu_custom_call.1} parent=1 // pred_check
      _
    $region19: #{tpu_custom_call.1} parent=1 // pred_check_branch
      %45 = sbr.rel (0) target = $region21
    $region20: #{tpu_custom_call.1} parent=1 // pred_region
      %s47 = ssub.s32 2048, 2048
      %48 = vsyncadd [#allocation7], %s47
      %s49 = sshll.u32 [#allocation8], 4
      %s50 = int_to_ptr.vmem [resolvable:$true] %s49
      %55 = dma.hbm_to_vmem [thread:$0]  %s4, 2048, %s50, [#allocation7], 64, 64, 4
    $region21: #{tpu_custom_call.1} parent=1 // pred_fallthru
      _
    // Predicated region
    $region22: #{tpu_custom_call.1} parent=1 // pred_check
      _
    $region23: #{tpu_custom_call.1} parent=1 // pred_check_branch
      %57 = sbr.rel (0) target = $region25
    $region24: #{tpu_custom_call.1} parent=1 // pred_region
      _
    $region25: #{tpu_custom_call.1} parent=1 // pred_fallthru
      _
    // Predicated region
    $region26: #{tpu_custom_call.1} parent=1 // pred_check
      _
    $region27: #{tpu_custom_call.1} parent=1 // pred_check_branch
      %59 = sbr.rel (0) target = $region29
    $region28: #{tpu_custom_call.1} parent=1 // pred_region
      %s61 = ssub.s32 1024, 1024
      %62 = vsyncadd [#allocation10], %s61
      %s63 = sshll.u32 [#allocation9], 4
      %s64 = int_to_ptr.vmem [resolvable:$true] %s63
      %69 = dma.hbm_to_vmem [thread:$0]  %s6, 1024, %s64, [#allocation10], 64, 64, 4
    $region29: #{tpu_custom_call.1} parent=1 // pred_fallthru
      _
    // Predicated region
    $region30: #{tpu_custom_call.1} parent=1 // pred_check
      _
    $region31: #{tpu_custom_call.1} parent=1 // pred_check_branch
      %71 = sbr.rel (0) target = $region33
    $region32: #{tpu_custom_call.1} parent=1 // pred_region
      _
    $region33: #{tpu_custom_call.1} parent=1 // pred_fallthru
      _
    // Predicated region
    $region34: #{tpu_custom_call.1} parent=1 // pred_check
      _
    $region35: #{tpu_custom_call.1} parent=1 // pred_check_branch
      %73 = sbr.rel (0) target = $region37
    $region36: #{tpu_custom_call.1} parent=1 // pred_region
      %74 = dma.done [#allocation4], 640
    $region37: #{tpu_custom_call.1} parent=1 // pred_fallthru
      _
    // Predicated region
    $region38: #{tpu_custom_call.1} parent=1 // pred_check
      _
    $region39: #{tpu_custom_call.1} parent=1 // pred_check_branch
      %76 = sbr.rel (0) target = $region41
    $region40: #{tpu_custom_call.1} parent=1 // pred_region
      %77 = dma.done [#allocation7], 20480
    $region41: #{tpu_custom_call.1} parent=1 // pred_fallthru
      _
    // Predicated region
    $region42: #{tpu_custom_call.1} parent=1 // pred_check
      _
    $region43: #{tpu_custom_call.1} parent=1 // pred_check_branch
      %79 = sbr.rel (0) target = $region45
    $region44: #{tpu_custom_call.1} parent=1 // pred_region
      %80 = dma.done [#allocation7], 2048
    $region45: #{tpu_custom_call.1} parent=1 // pred_fallthru
      _
    // Predicated region
    $region46: #{tpu_custom_call.1} parent=1 // pred_check
      _
    $region47: #{tpu_custom_call.1} parent=1 // pred_check_branch
      %82 = sbr.rel (0) target = $region49
    $region48: #{tpu_custom_call.1} parent=1 // pred_region
      %83 = dma.done [#allocation10], 1024
    $region49: #{tpu_custom_call.1} parent=1 // pred_fallthru
      _
    %s85 = sld [smem:[#allocation2]]
    %v86 = vld [vmem:[#allocation3] sm:$0xff]
    %v87 = vld [vmem:[#allocation3 + $0x8] sm:$0xff]
    %v88 = vld [vmem:[#allocation3 + $0x10] sm:$0xff]
    %v89 = vld [vmem:[#allocation3 + $0x18] sm:$0xff]
    %v90 = vld [vmem:[#allocation3 + $0x20] sm:$0xff]
    %v91 = vld [vmem:[#allocation6] sm:$0xff]
    %v92 = vld [vmem:[#allocation6 + $0x8] sm:$0xff]
    %v93 = vld [vmem:[#allocation6 + $0x10] sm:$0xff]
    %v94 = vld [vmem:[#allocation6 + $0x18] sm:$0xff]
    %v95 = vld [vmem:[#allocation6 + $0x20] sm:$0xff]
    %v96 = vld [vmem:[#allocation6 + $0x28] sm:$0xff]
    %v97 = vld [vmem:[#allocation6 + $0x30] sm:$0xff]
    %v98 = vld [vmem:[#allocation6 + $0x38] sm:$0xff]
    %v99 = vld [vmem:[#allocation6 + $0x40] sm:$0xff]
    %v100 = vld [vmem:[#allocation6 + $0x48] sm:$0xff]
    %v101 = vld [vmem:[#allocation6 + $0x50] sm:$0xff]
    %v102 = vld [vmem:[#allocation6 + $0x58] sm:$0xff]
    %v103 = vld [vmem:[#allocation6 + $0x60] sm:$0xff]
    %v104 = vld [vmem:[#allocation6 + $0x68] sm:$0xff]
    %v105 = vld [vmem:[#allocation6 + $0x70] sm:$0xff]
    %v106 = vld [vmem:[#allocation6 + $0x78] sm:$0xff]
    %v107 = vld [vmem:[#allocation6 + $0x80] sm:$0xff]
    %v108 = vld [vmem:[#allocation6 + $0x88] sm:$0xff]
    %v109 = vld [vmem:[#allocation6 + $0x90] sm:$0xff]
    %v110 = vld [vmem:[#allocation6 + $0x98] sm:$0xff]
    %v111 = vld [vmem:[#allocation6 + $0xa0] sm:$0xff]
    %v112 = vld [vmem:[#allocation6 + $0xa8] sm:$0xff]
    %v113 = vld [vmem:[#allocation6 + $0xb0] sm:$0xff]
    %v114 = vld [vmem:[#allocation6 + $0xb8] sm:$0xff]
    %v115 = vld [vmem:[#allocation6 + $0xc0] sm:$0xff]
    %v116 = vld [vmem:[#allocation6 + $0xc8] sm:$0xff]
    %v117 = vld [vmem:[#allocation6 + $0xd0] sm:$0xff]
    %v118 = vld [vmem:[#allocation6 + $0xd8] sm:$0xff]
    %v119 = vld [vmem:[#allocation6 + $0xe0] sm:$0xff]
    %v120 = vld [vmem:[#allocation6 + $0xe8] sm:$0xff]
    %v121 = vld [vmem:[#allocation6 + $0xf0] sm:$0xff]
    %v122 = vld [vmem:[#allocation6 + $0xf8] sm:$0xff]
    %v123 = vld [vmem:[#allocation6 + $0x100] sm:$0xff]
    %v124 = vld [vmem:[#allocation6 + $0x108] sm:$0xff]
    %v125 = vld [vmem:[#allocation6 + $0x110] sm:$0xff]
    %v126 = vld [vmem:[#allocation6 + $0x118] sm:$0xff]
    %v127 = vld [vmem:[#allocation6 + $0x120] sm:$0xff]
    %v128 = vld [vmem:[#allocation6 + $0x128] sm:$0xff]
    %v129 = vld [vmem:[#allocation6 + $0x130] sm:$0xff]
    %v130 = vld [vmem:[#allocation6 + $0x138] sm:$0xff]
    %v131 = vld [vmem:[#allocation6 + $0x140] sm:$0xff]
    %v132 = vld [vmem:[#allocation6 + $0x148] sm:$0xff]
    %v133 = vld [vmem:[#allocation6 + $0x150] sm:$0xff]
    %v134 = vld [vmem:[#allocation6 + $0x158] sm:$0xff]
    %v135 = vld [vmem:[#allocation6 + $0x160] sm:$0xff]
    %v136 = vld [vmem:[#allocation6 + $0x168] sm:$0xff]
    %v137 = vld [vmem:[#allocation6 + $0x170] sm:$0xff]
    %v138 = vld [vmem:[#allocation6 + $0x178] sm:$0xff]
    %v139 = vld [vmem:[#allocation6 + $0x180] sm:$0xff]
    %v140 = vld [vmem:[#allocation6 + $0x188] sm:$0xff]
    %v141 = vld [vmem:[#allocation6 + $0x190] sm:$0xff]
    %v142 = vld [vmem:[#allocation6 + $0x198] sm:$0xff]
    %v143 = vld [vmem:[#allocation6 + $0x1a0] sm:$0xff]
    %v144 = vld [vmem:[#allocation6 + $0x1a8] sm:$0xff]
    %v145 = vld [vmem:[#allocation6 + $0x1b0] sm:$0xff]
    %v146 = vld [vmem:[#allocation6 + $0x1b8] sm:$0xff]
    %v147 = vld [vmem:[#allocation6 + $0x1c0] sm:$0xff]
    %v148 = vld [vmem:[#allocation6 + $0x1c8] sm:$0xff]
    %v149 = vld [vmem:[#allocation6 + $0x1d0] sm:$0xff]
    %v150 = vld [vmem:[#allocation6 + $0x1d8] sm:$0xff]
    %v151 = vld [vmem:[#allocation6 + $0x1e0] sm:$0xff]
    %v152 = vld [vmem:[#allocation6 + $0x1e8] sm:$0xff]
    %v153 = vld [vmem:[#allocation6 + $0x1f0] sm:$0xff]
    %v154 = vld [vmem:[#allocation6 + $0x1f8] sm:$0xff]
    %v155 = vld [vmem:[#allocation6 + $0x200] sm:$0xff]
    %v156 = vld [vmem:[#allocation6 + $0x208] sm:$0xff]
    %v157 = vld [vmem:[#allocation6 + $0x210] sm:$0xff]
    %v158 = vld [vmem:[#allocation6 + $0x218] sm:$0xff]
    %v159 = vld [vmem:[#allocation6 + $0x220] sm:$0xff]
    %v160 = vld [vmem:[#allocation6 + $0x228] sm:$0xff]
    %v161 = vld [vmem:[#allocation6 + $0x230] sm:$0xff]
    %v162 = vld [vmem:[#allocation6 + $0x238] sm:$0xff]
    %v163 = vld [vmem:[#allocation6 + $0x240] sm:$0xff]
    %v164 = vld [vmem:[#allocation6 + $0x248] sm:$0xff]
    %v165 = vld [vmem:[#allocation6 + $0x250] sm:$0xff]
    %v166 = vld [vmem:[#allocation6 + $0x258] sm:$0xff]
    %v167 = vld [vmem:[#allocation6 + $0x260] sm:$0xff]
    %v168 = vld [vmem:[#allocation6 + $0x268] sm:$0xff]
    %v169 = vld [vmem:[#allocation6 + $0x270] sm:$0xff]
    %v170 = vld [vmem:[#allocation6 + $0x278] sm:$0xff]
    %v171 = vld [vmem:[#allocation6 + $0x280] sm:$0xff]
    %v172 = vld [vmem:[#allocation6 + $0x288] sm:$0xff]
    %v173 = vld [vmem:[#allocation6 + $0x290] sm:$0xff]
    %v174 = vld [vmem:[#allocation6 + $0x298] sm:$0xff]
    %v175 = vld [vmem:[#allocation6 + $0x2a0] sm:$0xff]
    %v176 = vld [vmem:[#allocation6 + $0x2a8] sm:$0xff]
    %v177 = vld [vmem:[#allocation6 + $0x2b0] sm:$0xff]
    %v178 = vld [vmem:[#allocation6 + $0x2b8] sm:$0xff]
    %v179 = vld [vmem:[#allocation6 + $0x2c0] sm:$0xff]
    %v180 = vld [vmem:[#allocation6 + $0x2c8] sm:$0xff]
    %v181 = vld [vmem:[#allocation6 + $0x2d0] sm:$0xff]
    %v182 = vld [vmem:[#allocation6 + $0x2d8] sm:$0xff]
    %v183 = vld [vmem:[#allocation6 + $0x2e0] sm:$0xff]
    %v184 = vld [vmem:[#allocation6 + $0x2e8] sm:$0xff]
    %v185 = vld [vmem:[#allocation6 + $0x2f0] sm:$0xff]
    %v186 = vld [vmem:[#allocation6 + $0x2f8] sm:$0xff]
    %v187 = vld [vmem:[#allocation6 + $0x300] sm:$0xff]
    %v188 = vld [vmem:[#allocation6 + $0x308] sm:$0xff]
    %v189 = vld [vmem:[#allocation6 + $0x310] sm:$0xff]
    %v190 = vld [vmem:[#allocation6 + $0x318] sm:$0xff]
    %v191 = vld [vmem:[#allocation6 + $0x320] sm:$0xff]
    %v192 = vld [vmem:[#allocation6 + $0x328] sm:$0xff]
    %v193 = vld [vmem:[#allocation6 + $0x330] sm:$0xff]
    %v194 = vld [vmem:[#allocation6 + $0x338] sm:$0xff]
    %v195 = vld [vmem:[#allocation6 + $0x340] sm:$0xff]
    %v196 = vld [vmem:[#allocation6 + $0x348] sm:$0xff]
    %v197 = vld [vmem:[#allocation6 + $0x350] sm:$0xff]
    %v198 = vld [vmem:[#allocation6 + $0x358] sm:$0xff]
    %v199 = vld [vmem:[#allocation6 + $0x360] sm:$0xff]
    %v200 = vld [vmem:[#allocation6 + $0x368] sm:$0xff]
    %v201 = vld [vmem:[#allocation6 + $0x370] sm:$0xff]
    %v202 = vld [vmem:[#allocation6 + $0x378] sm:$0xff]
    %v203 = vld [vmem:[#allocation6 + $0x380] sm:$0xff]
    %v204 = vld [vmem:[#allocation6 + $0x388] sm:$0xff]
    %v205 = vld [vmem:[#allocation6 + $0x390] sm:$0xff]
    %v206 = vld [vmem:[#allocation6 + $0x398] sm:$0xff]
    %v207 = vld [vmem:[#allocation6 + $0x3a0] sm:$0xff]
    %v208 = vld [vmem:[#allocation6 + $0x3a8] sm:$0xff]
    %v209 = vld [vmem:[#allocation6 + $0x3b0] sm:$0xff]
    %v210 = vld [vmem:[#allocation6 + $0x3b8] sm:$0xff]
    %v211 = vld [vmem:[#allocation6 + $0x3c0] sm:$0xff]
    %v212 = vld [vmem:[#allocation6 + $0x3c8] sm:$0xff]
    %v213 = vld [vmem:[#allocation6 + $0x3d0] sm:$0xff]
    %v214 = vld [vmem:[#allocation6 + $0x3d8] sm:$0xff]
    %v215 = vld [vmem:[#allocation6 + $0x3e0] sm:$0xff]
    %v216 = vld [vmem:[#allocation6 + $0x3e8] sm:$0xff]
    %v217 = vld [vmem:[#allocation6 + $0x3f0] sm:$0xff]
    %v218 = vld [vmem:[#allocation6 + $0x3f8] sm:$0xff]
    %v219 = vld [vmem:[#allocation6 + $0x400] sm:$0xff]
    %v220 = vld [vmem:[#allocation6 + $0x408] sm:$0xff]
    %v221 = vld [vmem:[#allocation6 + $0x410] sm:$0xff]
    %v222 = vld [vmem:[#allocation6 + $0x418] sm:$0xff]
    %v223 = vld [vmem:[#allocation6 + $0x420] sm:$0xff]
    %v224 = vld [vmem:[#allocation6 + $0x428] sm:$0xff]
    %v225 = vld [vmem:[#allocation6 + $0x430] sm:$0xff]
    %v226 = vld [vmem:[#allocation6 + $0x438] sm:$0xff]
    %v227 = vld [vmem:[#allocation6 + $0x440] sm:$0xff]
    %v228 = vld [vmem:[#allocation6 + $0x448] sm:$0xff]
    %v229 = vld [vmem:[#allocation6 + $0x450] sm:$0xff]
    %v230 = vld [vmem:[#allocation6 + $0x458] sm:$0xff]
    %v231 = vld [vmem:[#allocation6 + $0x460] sm:$0xff]
    %v232 = vld [vmem:[#allocation6 + $0x468] sm:$0xff]
    %v233 = vld [vmem:[#allocation6 + $0x470] sm:$0xff]
    %v234 = vld [vmem:[#allocation6 + $0x478] sm:$0xff]
    %v235 = vld [vmem:[#allocation6 + $0x480] sm:$0xff]
    %v236 = vld [vmem:[#allocation6 + $0x488] sm:$0xff]
    %v237 = vld [vmem:[#allocation6 + $0x490] sm:$0xff]
    %v238 = vld [vmem:[#allocation6 + $0x498] sm:$0xff]
    %v239 = vld [vmem:[#allocation6 + $0x4a0] sm:$0xff]
    %v240 = vld [vmem:[#allocation6 + $0x4a8] sm:$0xff]
    %v241 = vld [vmem:[#allocation6 + $0x4b0] sm:$0xff]
    %v242 = vld [vmem:[#allocation6 + $0x4b8] sm:$0xff]
    %v243 = vld [vmem:[#allocation6 + $0x4c0] sm:$0xff]
    %v244 = vld [vmem:[#allocation6 + $0x4c8] sm:$0xff]
    %v245 = vld [vmem:[#allocation6 + $0x4d0] sm:$0xff]
    %v246 = vld [vmem:[#allocation6 + $0x4d8] sm:$0xff]
    %v247 = vld [vmem:[#allocation6 + $0x4e0] sm:$0xff]
    %v248 = vld [vmem:[#allocation6 + $0x4e8] sm:$0xff]
    %v249 = vld [vmem:[#allocation6 + $0x4f0] sm:$0xff]
    %v250 = vld [vmem:[#allocation6 + $0x4f8] sm:$0xff]
    %v251 = vld [vmem:[%s3] sm:$0x3]
    %v253 = vlaneseq
    %v254 = vshrl.u32 %v253, 7
    %v255 = vsub.s32 0, %v254
    %v256 = vrot.slane %v251, %v255
    %v257 = vlaneseq
    %v258 = vshrl.u32 %v257, 7
    %v259 = vsub.s32 1, %v258
    %v260 = vrot.slane %v251, %v259
    %v268 = vunpack.c.l.b16 %v86
    %v269 = vunpack.c.h.b16 %v86
    %v270 = vunpack.c.l.b16 %v87
    %v271 = vunpack.c.h.b16 %v87
    %v272 = vunpack.c.l.b16 %v88
    %v273 = vunpack.c.h.b16 %v88
    %v274 = vunpack.c.l.b16 %v89
    %v275 = vunpack.c.h.b16 %v89
    %v276 = vunpack.c.l.b16 %v90
    %v277 = vunpack.c.h.b16 %v90
    %v278 = vpack.c.b16 %v268, %v268
    %v279 = vpack.c.b16 %v269, %v269
    %v280 = vpack.c.b16 %v270, %v270
    %v281 = vpack.c.b16 %v271, %v271
    %v282 = vpack.c.b16 %v272, %v272
    %v283 = vpack.c.b16 %v273, %v273
    %v284 = vpack.c.b16 %v274, %v274
    %v285 = vpack.c.b16 %v275, %v275
    %v286 = vpack.c.b16 %v276, %v276
    %v287 = vpack.c.b16 %v277, %v277
    %v458 = vunpack.c.l.b16 %v91
    %v459 = vunpack.c.h.b16 %v91
    %v460 = vunpack.c.l.b16 %v92
    %v461 = vunpack.c.h.b16 %v92
    %v462 = vunpack.c.l.b16 %v93
    %v463 = vunpack.c.h.b16 %v93
    %v464 = vunpack.c.l.b16 %v94
    %v465 = vunpack.c.h.b16 %v94
    %v466 = vunpack.c.l.b16 %v95
    %v467 = vunpack.c.h.b16 %v95
    %v468 = vunpack.c.l.b16 %v96
    %v469 = vunpack.c.h.b16 %v96
    %v470 = vunpack.c.l.b16 %v97
    %v471 = vunpack.c.h.b16 %v97
    %v472 = vunpack.c.l.b16 %v98
    %v473 = vunpack.c.h.b16 %v98
    %v474 = vunpack.c.l.b16 %v99
    %v475 = vunpack.c.h.b16 %v99
    %v476 = vunpack.c.l.b16 %v100
    %v477 = vunpack.c.h.b16 %v100
    %v478 = vunpack.c.l.b16 %v101
    %v479 = vunpack.c.h.b16 %v101
    %v480 = vunpack.c.l.b16 %v102
    %v481 = vunpack.c.h.b16 %v102
    %v482 = vunpack.c.l.b16 %v103
    %v483 = vunpack.c.h.b16 %v103
    %v484 = vunpack.c.l.b16 %v104
    %v485 = vunpack.c.h.b16 %v104
    %v486 = vunpack.c.l.b16 %v105
    %v487 = vunpack.c.h.b16 %v105
    %v488 = vunpack.c.l.b16 %v106
    %v489 = vunpack.c.h.b16 %v106
    %v490 = vunpack.c.l.b16 %v107
    %v491 = vunpack.c.h.b16 %v107
    %v492 = vunpack.c.l.b16 %v108
    %v493 = vunpack.c.h.b16 %v108
    %v494 = vunpack.c.l.b16 %v109
    %v495 = vunpack.c.h.b16 %v109
    %v496 = vunpack.c.l.b16 %v110
    %v497 = vunpack.c.h.b16 %v110
    %v498 = vunpack.c.l.b16 %v111
    %v499 = vunpack.c.h.b16 %v111
    %v500 = vunpack.c.l.b16 %v112
    %v501 = vunpack.c.h.b16 %v112
    %v502 = vunpack.c.l.b16 %v113
    %v503 = vunpack.c.h.b16 %v113
    %v504 = vunpack.c.l.b16 %v114
    %v505 = vunpack.c.h.b16 %v114
    %v506 = vunpack.c.l.b16 %v115
    %v507 = vunpack.c.h.b16 %v115
    %v508 = vunpack.c.l.b16 %v116
    %v509 = vunpack.c.h.b16 %v116
    %v510 = vunpack.c.l.b16 %v117
    %v511 = vunpack.c.h.b16 %v117
    %v512 = vunpack.c.l.b16 %v118
    %v513 = vunpack.c.h.b16 %v118
    %v514 = vunpack.c.l.b16 %v119
    %v515 = vunpack.c.h.b16 %v119
    %v516 = vunpack.c.l.b16 %v120
    %v517 = vunpack.c.h.b16 %v120
    %v518 = vunpack.c.l.b16 %v121
    %v519 = vunpack.c.h.b16 %v121
    %v520 = vunpack.c.l.b16 %v122
    %v521 = vunpack.c.h.b16 %v122
    %v522 = vunpack.c.l.b16 %v123
    %v523 = vunpack.c.h.b16 %v123
    %v524 = vunpack.c.l.b16 %v124
    %v525 = vunpack.c.h.b16 %v124
    %v526 = vunpack.c.l.b16 %v125
    %v527 = vunpack.c.h.b16 %v125
    %v528 = vunpack.c.l.b16 %v126
    %v529 = vunpack.c.h.b16 %v126
    %v530 = vunpack.c.l.b16 %v127
    %v531 = vunpack.c.h.b16 %v127
    %v532 = vunpack.c.l.b16 %v128
    %v533 = vunpack.c.h.b16 %v128
    %v534 = vunpack.c.l.b16 %v129
    %v535 = vunpack.c.h.b16 %v129
    %v536 = vunpack.c.l.b16 %v130
    %v537 = vunpack.c.h.b16 %v130
    %v538 = vunpack.c.l.b16 %v131
    %v539 = vunpack.c.h.b16 %v131
    %v540 = vunpack.c.l.b16 %v132
    %v541 = vunpack.c.h.b16 %v132
    %v542 = vunpack.c.l.b16 %v133
    %v543 = vunpack.c.h.b16 %v133
    %v544 = vunpack.c.l.b16 %v134
    %v545 = vunpack.c.h.b16 %v134
    %v546 = vunpack.c.l.b16 %v135
    %v547 = vunpack.c.h.b16 %v135
    %v548 = vunpack.c.l.b16 %v136
    %v549 = vunpack.c.h.b16 %v136
    %v550 = vunpack.c.l.b16 %v137
    %v551 = vunpack.c.h.b16 %v137
    %v552 = vunpack.c.l.b16 %v138
    %v553 = vunpack.c.h.b16 %v138
    %v554 = vunpack.c.l.b16 %v139
    %v555 = vunpack.c.h.b16 %v139
    %v556 = vunpack.c.l.b16 %v140
    %v557 = vunpack.c.h.b16 %v140
    %v558 = vunpack.c.l.b16 %v141
    %v559 = vunpack.c.h.b16 %v141
    %v560 = vunpack.c.l.b16 %v142
    %v561 = vunpack.c.h.b16 %v142
    %v562 = vunpack.c.l.b16 %v143
    %v563 = vunpack.c.h.b16 %v143
    %v564 = vunpack.c.l.b16 %v144
    %v565 = vunpack.c.h.b16 %v144
    %v566 = vunpack.c.l.b16 %v145
    %v567 = vunpack.c.h.b16 %v145
    %v568 = vunpack.c.l.b16 %v146
    %v569 = vunpack.c.h.b16 %v146
    %v570 = vunpack.c.l.b16 %v147
    %v571 = vunpack.c.h.b16 %v147
    %v572 = vunpack.c.l.b16 %v148
    %v573 = vunpack.c.h.b16 %v148
    %v574 = vunpack.c.l.b16 %v149
    %v575 = vunpack.c.h.b16 %v149
    %v576 = vunpack.c.l.b16 %v150
    %v577 = vunpack.c.h.b16 %v150
    %v578 = vunpack.c.l.b16 %v151
    %v579 = vunpack.c.h.b16 %v151
    %v580 = vunpack.c.l.b16 %v152
    %v581 = vunpack.c.h.b16 %v152
    %v582 = vunpack.c.l.b16 %v153
    %v583 = vunpack.c.h.b16 %v153
    %v584 = vunpack.c.l.b16 %v154
    %v585 = vunpack.c.h.b16 %v154
    %v586 = vunpack.c.l.b16 %v155
    %v587 = vunpack.c.h.b16 %v155
    %v588 = vunpack.c.l.b16 %v156
    %v589 = vunpack.c.h.b16 %v156
    %v590 = vunpack.c.l.b16 %v157
    %v591 = vunpack.c.h.b16 %v157
    %v592 = vunpack.c.l.b16 %v158
    %v593 = vunpack.c.h.b16 %v158
    %v594 = vunpack.c.l.b16 %v159
    %v595 = vunpack.c.h.b16 %v159
    %v596 = vunpack.c.l.b16 %v160
    %v597 = vunpack.c.h.b16 %v160
    %v598 = vunpack.c.l.b16 %v161
    %v599 = vunpack.c.h.b16 %v161
    %v600 = vunpack.c.l.b16 %v162
    %v601 = vunpack.c.h.b16 %v162
    %v602 = vunpack.c.l.b16 %v163
    %v603 = vunpack.c.h.b16 %v163
    %v604 = vunpack.c.l.b16 %v164
    %v605 = vunpack.c.h.b16 %v164
    %v606 = vunpack.c.l.b16 %v165
    %v607 = vunpack.c.h.b16 %v165
    %v608 = vunpack.c.l.b16 %v166
    %v609 = vunpack.c.h.b16 %v166
    %v610 = vunpack.c.l.b16 %v167
    %v611 = vunpack.c.h.b16 %v167
    %v612 = vunpack.c.l.b16 %v168
    %v613 = vunpack.c.h.b16 %v168
    %v614 = vunpack.c.l.b16 %v169
    %v615 = vunpack.c.h.b16 %v169
    %v616 = vunpack.c.l.b16 %v170
    %v617 = vunpack.c.h.b16 %v170
    %v618 = vunpack.c.l.b16 %v171
    %v619 = vunpack.c.h.b16 %v171
    %v620 = vunpack.c.l.b16 %v172
    %v621 = vunpack.c.h.b16 %v172
    %v622 = vunpack.c.l.b16 %v173
    %v623 = vunpack.c.h.b16 %v173
    %v624 = vunpack.c.l.b16 %v174
    %v625 = vunpack.c.h.b16 %v174
    %v626 = vunpack.c.l.b16 %v175
    %v627 = vunpack.c.h.b16 %v175
    %v628 = vunpack.c.l.b16 %v176
    %v629 = vunpack.c.h.b16 %v176
    %v630 = vunpack.c.l.b16 %v177
    %v631 = vunpack.c.h.b16 %v177
    %v632 = vunpack.c.l.b16 %v178
    %v633 = vunpack.c.h.b16 %v178
    %v634 = vunpack.c.l.b16 %v179
    %v635 = vunpack.c.h.b16 %v179
    %v636 = vunpack.c.l.b16 %v180
    %v637 = vunpack.c.h.b16 %v180
    %v638 = vunpack.c.l.b16 %v181
    %v639 = vunpack.c.h.b16 %v181
    %v640 = vunpack.c.l.b16 %v182
    %v641 = vunpack.c.h.b16 %v182
    %v642 = vunpack.c.l.b16 %v183
    %v643 = vunpack.c.h.b16 %v183
    %v644 = vunpack.c.l.b16 %v184
    %v645 = vunpack.c.h.b16 %v184
    %v646 = vunpack.c.l.b16 %v185
    %v647 = vunpack.c.h.b16 %v185
    %v648 = vunpack.c.l.b16 %v186
    %v649 = vunpack.c.h.b16 %v186
    %v650 = vunpack.c.l.b16 %v187
    %v651 = vunpack.c.h.b16 %v187
    %v652 = vunpack.c.l.b16 %v188
    %v653 = vunpack.c.h.b16 %v188
    %v654 = vunpack.c.l.b16 %v189
    %v655 = vunpack.c.h.b16 %v189
    %v656 = vunpack.c.l.b16 %v190
    %v657 = vunpack.c.h.b16 %v190
    %v658 = vunpack.c.l.b16 %v191
    %v659 = vunpack.c.h.b16 %v191
    %v660 = vunpack.c.l.b16 %v192
    %v661 = vunpack.c.h.b16 %v192
    %v662 = vunpack.c.l.b16 %v193
    %v663 = vunpack.c.h.b16 %v193
    %v664 = vunpack.c.l.b16 %v194
    %v665 = vunpack.c.h.b16 %v194
    %v666 = vunpack.c.l.b16 %v195
    %v667 = vunpack.c.h.b16 %v195
    %v668 = vunpack.c.l.b16 %v196
    %v669 = vunpack.c.h.b16 %v196
    %v670 = vunpack.c.l.b16 %v197
    %v671 = vunpack.c.h.b16 %v197
    %v672 = vunpack.c.l.b16 %v198
    %v673 = vunpack.c.h.b16 %v198
    %v674 = vunpack.c.l.b16 %v199
    %v675 = vunpack.c.h.b16 %v199
    %v676 = vunpack.c.l.b16 %v200
    %v677 = vunpack.c.h.b16 %v200
    %v678 = vunpack.c.l.b16 %v201
    %v679 = vunpack.c.h.b16 %v201
    %v680 = vunpack.c.l.b16 %v202
    %v681 = vunpack.c.h.b16 %v202
    %v682 = vunpack.c.l.b16 %v203
    %v683 = vunpack.c.h.b16 %v203
    %v684 = vunpack.c.l.b16 %v204
    %v685 = vunpack.c.h.b16 %v204
    %v686 = vunpack.c.l.b16 %v205
    %v687 = vunpack.c.h.b16 %v205
    %v688 = vunpack.c.l.b16 %v206
    %v689 = vunpack.c.h.b16 %v206
    %v690 = vunpack.c.l.b16 %v207
    %v691 = vunpack.c.h.b16 %v207
    %v692 = vunpack.c.l.b16 %v208
    %v693 = vunpack.c.h.b16 %v208
    %v694 = vunpack.c.l.b16 %v209
    %v695 = vunpack.c.h.b16 %v209
    %v696 = vunpack.c.l.b16 %v210
    %v697 = vunpack.c.h.b16 %v210
    %v698 = vunpack.c.l.b16 %v211
    %v699 = vunpack.c.h.b16 %v211
    %v700 = vunpack.c.l.b16 %v212
    %v701 = vunpack.c.h.b16 %v212
    %v702 = vunpack.c.l.b16 %v213
    %v703 = vunpack.c.h.b16 %v213
    %v704 = vunpack.c.l.b16 %v214
    %v705 = vunpack.c.h.b16 %v214
    %v706 = vunpack.c.l.b16 %v215
    %v707 = vunpack.c.h.b16 %v215
    %v708 = vunpack.c.l.b16 %v216
    %v709 = vunpack.c.h.b16 %v216
    %v710 = vunpack.c.l.b16 %v217
    %v711 = vunpack.c.h.b16 %v217
    %v712 = vunpack.c.l.b16 %v218
    %v713 = vunpack.c.h.b16 %v218
    %v714 = vunpack.c.l.b16 %v219
    %v715 = vunpack.c.h.b16 %v219
    %v716 = vunpack.c.l.b16 %v220
    %v717 = vunpack.c.h.b16 %v220
    %v718 = vunpack.c.l.b16 %v221
    %v719 = vunpack.c.h.b16 %v221
    %v720 = vunpack.c.l.b16 %v222
    %v721 = vunpack.c.h.b16 %v222
    %v722 = vunpack.c.l.b16 %v223
    %v723 = vunpack.c.h.b16 %v223
    %v724 = vunpack.c.l.b16 %v224
    %v725 = vunpack.c.h.b16 %v224
    %v726 = vunpack.c.l.b16 %v225
    %v727 = vunpack.c.h.b16 %v225
    %v728 = vunpack.c.l.b16 %v226
    %v729 = vunpack.c.h.b16 %v226
    %v730 = vunpack.c.l.b16 %v227
    %v731 = vunpack.c.h.b16 %v227
    %v732 = vunpack.c.l.b16 %v228
    %v733 = vunpack.c.h.b16 %v228
    %v734 = vunpack.c.l.b16 %v229
    %v735 = vunpack.c.h.b16 %v229
    %v736 = vunpack.c.l.b16 %v230
    %v737 = vunpack.c.h.b16 %v230
    %v738 = vunpack.c.l.b16 %v231
    %v739 = vunpack.c.h.b16 %v231
    %v740 = vunpack.c.l.b16 %v232
    %v741 = vunpack.c.h.b16 %v232
    %v742 = vunpack.c.l.b16 %v233
    %v743 = vunpack.c.h.b16 %v233
    %v744 = vunpack.c.l.b16 %v234
    %v745 = vunpack.c.h.b16 %v234
    %v746 = vunpack.c.l.b16 %v235
    %v747 = vunpack.c.h.b16 %v235
    %v748 = vunpack.c.l.b16 %v236
    %v749 = vunpack.c.h.b16 %v236
    %v750 = vunpack.c.l.b16 %v237
    %v751 = vunpack.c.h.b16 %v237
    %v752 = vunpack.c.l.b16 %v238
    %v753 = vunpack.c.h.b16 %v238
    %v754 = vunpack.c.l.b16 %v239
    %v755 = vunpack.c.h.b16 %v239
    %v756 = vunpack.c.l.b16 %v240
    %v757 = vunpack.c.h.b16 %v240
    %v758 = vunpack.c.l.b16 %v241
    %v759 = vunpack.c.h.b16 %v241
    %v760 = vunpack.c.l.b16 %v242
    %v761 = vunpack.c.h.b16 %v242
    %v762 = vunpack.c.l.b16 %v243
    %v763 = vunpack.c.h.b16 %v243
    %v764 = vunpack.c.l.b16 %v244
    %v765 = vunpack.c.h.b16 %v244
    %v766 = vunpack.c.l.b16 %v245
    %v767 = vunpack.c.h.b16 %v245
    %v768 = vunpack.c.l.b16 %v246
    %v769 = vunpack.c.h.b16 %v246
    %v770 = vunpack.c.l.b16 %v247
    %v771 = vunpack.c.h.b16 %v247
    %v772 = vunpack.c.l.b16 %v248
    %v773 = vunpack.c.h.b16 %v248
    %v774 = vunpack.c.l.b16 %v249
    %v775 = vunpack.c.h.b16 %v249
    %v776 = vunpack.c.l.b16 %v250
    %v777 = vunpack.c.h.b16 %v250
    %v778 = vpack.c.b16 %v460, %v458
    %v779 = vpack.c.b16 %v461, %v459
    %v780 = vpack.c.b16 %v464, %v462
    %v781 = vpack.c.b16 %v465, %v463
    %v782 = vpack.c.b16 %v468, %v466
    %v783 = vpack.c.b16 %v469, %v467
    %v784 = vpack.c.b16 %v472, %v470
    %v785 = vpack.c.b16 %v473, %v471
    %v786 = vpack.c.b16 %v476, %v474
    %v787 = vpack.c.b16 %v477, %v475
    %v788 = vpack.c.b16 %v480, %v478
    %v789 = vpack.c.b16 %v481, %v479
    %v790 = vpack.c.b16 %v484, %v482
    %v791 = vpack.c.b16 %v485, %v483
    %v792 = vpack.c.b16 %v488, %v486
    %v793 = vpack.c.b16 %v489, %v487
    %v794 = vpack.c.b16 %v492, %v490
    %v795 = vpack.c.b16 %v493, %v491
    %v796 = vpack.c.b16 %v496, %v494
    %v797 = vpack.c.b16 %v497, %v495
    %v798 = vpack.c.b16 %v500, %v498
    %v799 = vpack.c.b16 %v501, %v499
    %v800 = vpack.c.b16 %v504, %v502
    %v801 = vpack.c.b16 %v505, %v503
    %v802 = vpack.c.b16 %v508, %v506
    %v803 = vpack.c.b16 %v509, %v507
    %v804 = vpack.c.b16 %v512, %v510
    %v805 = vpack.c.b16 %v513, %v511
    %v806 = vpack.c.b16 %v516, %v514
    %v807 = vpack.c.b16 %v517, %v515
    %v808 = vpack.c.b16 %v520, %v518
    %v809 = vpack.c.b16 %v521, %v519
    %v810 = vpack.c.b16 %v524, %v522
    %v811 = vpack.c.b16 %v525, %v523
    %v812 = vpack.c.b16 %v528, %v526
    %v813 = vpack.c.b16 %v529, %v527
    %v814 = vpack.c.b16 %v532, %v530
    %v815 = vpack.c.b16 %v533, %v531
    %v816 = vpack.c.b16 %v536, %v534
    %v817 = vpack.c.b16 %v537, %v535
    %v818 = vpack.c.b16 %v540, %v538
    %v819 = vpack.c.b16 %v541, %v539
    %v820 = vpack.c.b16 %v544, %v542
    %v821 = vpack.c.b16 %v545, %v543
    %v822 = vpack.c.b16 %v548, %v546
    %v823 = vpack.c.b16 %v549, %v547
    %v824 = vpack.c.b16 %v552, %v550
    %v825 = vpack.c.b16 %v553, %v551
    %v826 = vpack.c.b16 %v556, %v554
    %v827 = vpack.c.b16 %v557, %v555
    %v828 = vpack.c.b16 %v560, %v558
    %v829 = vpack.c.b16 %v561, %v559
    %v830 = vpack.c.b16 %v564, %v562
    %v831 = vpack.c.b16 %v565, %v563
    %v832 = vpack.c.b16 %v568, %v566
    %v833 = vpack.c.b16 %v569, %v567
    %v834 = vpack.c.b16 %v572, %v570
    %v835 = vpack.c.b16 %v573, %v571
    %v836 = vpack.c.b16 %v576, %v574
    %v837 = vpack.c.b16 %v577, %v575
    %v838 = vpack.c.b16 %v580, %v578
    %v839 = vpack.c.b16 %v581, %v579
    %v840 = vpack.c.b16 %v584, %v582
    %v841 = vpack.c.b16 %v585, %v583
    %v842 = vpack.c.b16 %v588, %v586
    %v843 = vpack.c.b16 %v589, %v587
    %v844 = vpack.c.b16 %v592, %v590
    %v845 = vpack.c.b16 %v593, %v591
    %v846 = vpack.c.b16 %v596, %v594
    %v847 = vpack.c.b16 %v597, %v595
    %v848 = vpack.c.b16 %v600, %v598
    %v849 = vpack.c.b16 %v601, %v599
    %v850 = vpack.c.b16 %v604, %v602
    %v851 = vpack.c.b16 %v605, %v603
    %v852 = vpack.c.b16 %v608, %v606
    %v853 = vpack.c.b16 %v609, %v607
    %v854 = vpack.c.b16 %v612, %v610
    %v855 = vpack.c.b16 %v613, %v611
    %v856 = vpack.c.b16 %v616, %v614
    %v857 = vpack.c.b16 %v617, %v615
    %v858 = vpack.c.b16 %v620, %v618
    %v859 = vpack.c.b16 %v621, %v619
    %v860 = vpack.c.b16 %v624, %v622
    %v861 = vpack.c.b16 %v625, %v623
    %v862 = vpack.c.b16 %v628, %v626
    %v863 = vpack.c.b16 %v629, %v627
    %v864 = vpack.c.b16 %v632, %v630
    %v865 = vpack.c.b16 %v633, %v631
    %v866 = vpack.c.b16 %v636, %v634
    %v867 = vpack.c.b16 %v637, %v635
    %v868 = vpack.c.b16 %v640, %v638
    %v869 = vpack.c.b16 %v641, %v639
    %v870 = vpack.c.b16 %v644, %v642
    %v871 = vpack.c.b16 %v645, %v643
    %v872 = vpack.c.b16 %v648, %v646
    %v873 = vpack.c.b16 %v649, %v647
    %v874 = vpack.c.b16 %v652, %v650
    %v875 = vpack.c.b16 %v653, %v651
    %v876 = vpack.c.b16 %v656, %v654
    %v877 = vpack.c.b16 %v657, %v655
    %v878 = vpack.c.b16 %v660, %v658
    %v879 = vpack.c.b16 %v661, %v659
    %v880 = vpack.c.b16 %v664, %v662
    %v881 = vpack.c.b16 %v665, %v663
    %v882 = vpack.c.b16 %v668, %v666
    %v883 = vpack.c.b16 %v669, %v667
    %v884 = vpack.c.b16 %v672, %v670
    %v885 = vpack.c.b16 %v673, %v671
    %v886 = vpack.c.b16 %v676, %v674
    %v887 = vpack.c.b16 %v677, %v675
    %v888 = vpack.c.b16 %v680, %v678
    %v889 = vpack.c.b16 %v681, %v679
    %v890 = vpack.c.b16 %v684, %v682
    %v891 = vpack.c.b16 %v685, %v683
    %v892 = vpack.c.b16 %v688, %v686
    %v893 = vpack.c.b16 %v689, %v687
    %v894 = vpack.c.b16 %v692, %v690
    %v895 = vpack.c.b16 %v693, %v691
    %v896 = vpack.c.b16 %v696, %v694
    %v897 = vpack.c.b16 %v697, %v695
    %v898 = vpack.c.b16 %v700, %v698
    %v899 = vpack.c.b16 %v701, %v699
    %v900 = vpack.c.b16 %v704, %v702
    %v901 = vpack.c.b16 %v705, %v703
    %v902 = vpack.c.b16 %v708, %v706
    %v903 = vpack.c.b16 %v709, %v707
    %v904 = vpack.c.b16 %v712, %v710
    %v905 = vpack.c.b16 %v713, %v711
    %v906 = vpack.c.b16 %v716, %v714
    %v907 = vpack.c.b16 %v717, %v715
    %v908 = vpack.c.b16 %v720, %v718
    %v909 = vpack.c.b16 %v721, %v719
    %v910 = vpack.c.b16 %v724, %v722
    %v911 = vpack.c.b16 %v725, %v723
    %v912 = vpack.c.b16 %v728, %v726
    %v913 = vpack.c.b16 %v729, %v727
    %v914 = vpack.c.b16 %v732, %v730
    %v915 = vpack.c.b16 %v733, %v731
    %v916 = vpack.c.b16 %v736, %v734
    %v917 = vpack.c.b16 %v737, %v735
    %v918 = vpack.c.b16 %v740, %v738
    %v919 = vpack.c.b16 %v741, %v739
    %v920 = vpack.c.b16 %v744, %v742
    %v921 = vpack.c.b16 %v745, %v743
    %v922 = vpack.c.b16 %v748, %v746
    %v923 = vpack.c.b16 %v749, %v747
    %v924 = vpack.c.b16 %v752, %v750
    %v925 = vpack.c.b16 %v753, %v751
    %v926 = vpack.c.b16 %v756, %v754
    %v927 = vpack.c.b16 %v757, %v755
    %v928 = vpack.c.b16 %v760, %v758
    %v929 = vpack.c.b16 %v761, %v759
    %v930 = vpack.c.b16 %v764, %v762
    %v931 = vpack.c.b16 %v765, %v763
    %v932 = vpack.c.b16 %v768, %v766
    %v933 = vpack.c.b16 %v769, %v767
    %v934 = vpack.c.b16 %v772, %v770
    %v935 = vpack.c.b16 %v773, %v771
    %v936 = vpack.c.b16 %v776, %v774
    %v937 = vpack.c.b16 %v777, %v775
    %1098 = vmatprep.subr.bf16.mxu0 %v779
    %1099 = vmatpush1.bf16.msra.mxu0 %v778
    %1100 = vmatprep.subr.bf16.mxu0 %v781
    %1101 = vmatpush1.bf16.msra.mxu0 %v780
    %1102 = vmatprep.subr.bf16.mxu0 %v783
    %1103 = vmatpush1.bf16.msra.mxu0 %v782
    %1104 = vmatprep.subr.bf16.mxu0 %v785
    %1105 = vmatpush1.bf16.msra.mxu0 %v784
    %1106 = vmatprep.subr.bf16.mxu0 %v787
    %1107 = vmatpush1.bf16.msra.mxu0 %v786
    %1108 = vmatprep.subr.bf16.mxu0 %v789
    %1109 = vmatpush1.bf16.msra.mxu0 %v788
    %1110 = vmatprep.subr.bf16.mxu0 %v791
    %1111 = vmatpush1.bf16.msra.mxu0 %v790
    %1112 = vmatprep.subr.bf16.mxu0 %v793
    %1113 = vmatpush1.bf16.msra.mxu0 %v792
    %1114 = vmatprep.subr.bf16.mxu0 %v795
    %1115 = vmatpush1.bf16.msra.mxu0 %v794
    %1116 = vmatprep.subr.bf16.mxu0 %v797
    %1117 = vmatpush1.bf16.msra.mxu0 %v796
    %1118 = vmatprep.subr.bf16.mxu0 %v799
    %1119 = vmatpush1.bf16.msra.mxu0 %v798
    %1120 = vmatprep.subr.bf16.mxu0 %v801
    %1121 = vmatpush1.bf16.msra.mxu0 %v800
    %1122 = vmatprep.subr.bf16.mxu0 %v803
    %1123 = vmatpush1.bf16.msra.mxu0 %v802
    %1124 = vmatprep.subr.bf16.mxu0 %v805
    %1125 = vmatpush1.bf16.msra.mxu0 %v804
    %1126 = vmatprep.subr.bf16.mxu0 %v807
    %1127 = vmatpush1.bf16.msra.mxu0 %v806
    %1128 = vmatprep.subr.bf16.mxu0 %v809
    %1129 = vmatpush1.bf16.msra.mxu0 %v808
    %1130 = vmatprep.mubr.bf16.mxu0 %v279
    %1131 = vmatmul.mubr.bf16.gmra.mrb[0].mxu0 %v278
    %v1132 = vpop.f32.mrb[0].mxu0
    %v1133 = vadd.f32 %v256, %v1132
    %v1134 = vpop.f32.mrb[0].mxu0
    %v1135 = vadd.f32 %v260, %v1134
    %v1136 = vpop.f32.mrb[0].mxu0
    %v1137 = vpop.f32.mrb[0].mxu0
    %1138 = vdwg.mxu0
    %1139 = vmatprep.subr.bf16.mxu0 %v811
    %1140 = vmatpush1.bf16.msra.mxu0 %v810
    %1141 = vmatprep.subr.bf16.mxu0 %v813
    %1142 = vmatpush1.bf16.msra.mxu0 %v812
    %1143 = vmatprep.subr.bf16.mxu0 %v815
    %1144 = vmatpush1.bf16.msra.mxu0 %v814
    %1145 = vmatprep.subr.bf16.mxu0 %v817
    %1146 = vmatpush1.bf16.msra.mxu0 %v816
    %1147 = vmatprep.subr.bf16.mxu0 %v819
    %1148 = vmatpush1.bf16.msra.mxu0 %v818
    %1149 = vmatprep.subr.bf16.mxu0 %v821
    %1150 = vmatpush1.bf16.msra.mxu0 %v820
    %1151 = vmatprep.subr.bf16.mxu0 %v823
    %1152 = vmatpush1.bf16.msra.mxu0 %v822
    %1153 = vmatprep.subr.bf16.mxu0 %v825
    %1154 = vmatpush1.bf16.msra.mxu0 %v824
    %1155 = vmatprep.subr.bf16.mxu0 %v827
    %1156 = vmatpush1.bf16.msra.mxu0 %v826
    %1157 = vmatprep.subr.bf16.mxu0 %v829
    %1158 = vmatpush1.bf16.msra.mxu0 %v828
    %1159 = vmatprep.subr.bf16.mxu0 %v831
    %1160 = vmatpush1.bf16.msra.mxu0 %v830
    %1161 = vmatprep.subr.bf16.mxu0 %v833
    %1162 = vmatpush1.bf16.msra.mxu0 %v832
    %1163 = vmatprep.subr.bf16.mxu0 %v835
    %1164 = vmatpush1.bf16.msra.mxu0 %v834
    %1165 = vmatprep.subr.bf16.mxu0 %v837
    %1166 = vmatpush1.bf16.msra.mxu0 %v836
    %1167 = vmatprep.subr.bf16.mxu0 %v839
    %1168 = vmatpush1.bf16.msra.mxu0 %v838
    %1169 = vmatprep.subr.bf16.mxu0 %v841
    %1170 = vmatpush1.bf16.msra.mxu0 %v840
    %1171 = vmatprep.mubr.bf16.mxu0 %v281
    %1172 = vmatmul.mubr.bf16.gmra.mrb[0].mxu0 %v280
    %v1173 = vpop.f32.mrb[0].mxu0
    %v1174 = vadd.f32 %v1133, %v1173
    %v1175 = vpop.f32.mrb[0].mxu0
    %v1176 = vadd.f32 %v1135, %v1175
    %v1177 = vpop.f32.mrb[0].mxu0
    %v1178 = vpop.f32.mrb[0].mxu0
    %1179 = vdwg.mxu0
    %1180 = vmatprep.subr.bf16.mxu0 %v843
    %1181 = vmatpush1.bf16.msra.mxu0 %v842
    %1182 = vmatprep.subr.bf16.mxu0 %v845
    %1183 = vmatpush1.bf16.msra.mxu0 %v844
    %1184 = vmatprep.subr.bf16.mxu0 %v847
    %1185 = vmatpush1.bf16.msra.mxu0 %v846
    %1186 = vmatprep.subr.bf16.mxu0 %v849
    %1187 = vmatpush1.bf16.msra.mxu0 %v848
    %1188 = vmatprep.subr.bf16.mxu0 %v851
    %1189 = vmatpush1.bf16.msra.mxu0 %v850
    %1190 = vmatprep.subr.bf16.mxu0 %v853
    %1191 = vmatpush1.bf16.msra.mxu0 %v852
    %1192 = vmatprep.subr.bf16.mxu0 %v855
    %1193 = vmatpush1.bf16.msra.mxu0 %v854
    %1194 = vmatprep.subr.bf16.mxu0 %v857
    %1195 = vmatpush1.bf16.msra.mxu0 %v856
    %1196 = vmatprep.subr.bf16.mxu0 %v859
    %1197 = vmatpush1.bf16.msra.mxu0 %v858
    %1198 = vmatprep.subr.bf16.mxu0 %v861
    %1199 = vmatpush1.bf16.msra.mxu0 %v860
    %1200 = vmatprep.subr.bf16.mxu0 %v863
    %1201 = vmatpush1.bf16.msra.mxu0 %v862
    %1202 = vmatprep.subr.bf16.mxu0 %v865
    %1203 = vmatpush1.bf16.msra.mxu0 %v864
    %1204 = vmatprep.subr.bf16.mxu0 %v867
    %1205 = vmatpush1.bf16.msra.mxu0 %v866
    %1206 = vmatprep.subr.bf16.mxu0 %v869
    %1207 = vmatpush1.bf16.msra.mxu0 %v868
    %1208 = vmatprep.subr.bf16.mxu0 %v871
    %1209 = vmatpush1.bf16.msra.mxu0 %v870
    %1210 = vmatprep.subr.bf16.mxu0 %v873
    %1211 = vmatpush1.bf16.msra.mxu0 %v872
    %1212 = vmatprep.mubr.bf16.mxu0 %v283
    %1213 = vmatmul.mubr.bf16.gmra.mrb[0].mxu0 %v282
    %v1214 = vpop.f32.mrb[0].mxu0
    %v1215 = vadd.f32 %v1174, %v1214
    %v1216 = vpop.f32.mrb[0].mxu0
    %v1217 = vadd.f32 %v1176, %v1216
    %v1218 = vpop.f32.mrb[0].mxu0
    %v1219 = vpop.f32.mrb[0].mxu0
    %1220 = vdwg.mxu0
    %1221 = vmatprep.subr.bf16.mxu0 %v875
    %1222 = vmatpush1.bf16.msra.mxu0 %v874
    %1223 = vmatprep.subr.bf16.mxu0 %v877
    %1224 = vmatpush1.bf16.msra.mxu0 %v876
    %1225 = vmatprep.subr.bf16.mxu0 %v879
    %1226 = vmatpush1.bf16.msra.mxu0 %v878
    %1227 = vmatprep.subr.bf16.mxu0 %v881
    %1228 = vmatpush1.bf16.msra.mxu0 %v880
    %1229 = vmatprep.subr.bf16.mxu0 %v883
    %1230 = vmatpush1.bf16.msra.mxu0 %v882
    %1231 = vmatprep.subr.bf16.mxu0 %v885
    %1232 = vmatpush1.bf16.msra.mxu0 %v884
    %1233 = vmatprep.subr.bf16.mxu0 %v887
    %1234 = vmatpush1.bf16.msra.mxu0 %v886
    %1235 = vmatprep.subr.bf16.mxu0 %v889
    %1236 = vmatpush1.bf16.msra.mxu0 %v888
    %1237 = vmatprep.subr.bf16.mxu0 %v891
    %1238 = vmatpush1.bf16.msra.mxu0 %v890
    %1239 = vmatprep.subr.bf16.mxu0 %v893
    %1240 = vmatpush1.bf16.msra.mxu0 %v892
    %1241 = vmatprep.subr.bf16.mxu0 %v895
    %1242 = vmatpush1.bf16.msra.mxu0 %v894
    %1243 = vmatprep.subr.bf16.mxu0 %v897
    %1244 = vmatpush1.bf16.msra.mxu0 %v896
    %1245 = vmatprep.subr.bf16.mxu0 %v899
    %1246 = vmatpush1.bf16.msra.mxu0 %v898
    %1247 = vmatprep.subr.bf16.mxu0 %v901
    %1248 = vmatpush1.bf16.msra.mxu0 %v900
    %1249 = vmatprep.subr.bf16.mxu0 %v903
    %1250 = vmatpush1.bf16.msra.mxu0 %v902
    %1251 = vmatprep.subr.bf16.mxu0 %v905
    %1252 = vmatpush1.bf16.msra.mxu0 %v904
    %1253 = vmatprep.mubr.bf16.mxu0 %v285
    %1254 = vmatmul.mubr.bf16.gmra.mrb[0].mxu0 %v284
    %v1255 = vpop.f32.mrb[0].mxu0
    %v1256 = vadd.f32 %v1215, %v1255
    %v1257 = vpop.f32.mrb[0].mxu0
    %v1258 = vadd.f32 %v1217, %v1257
    %v1259 = vpop.f32.mrb[0].mxu0
    %v1260 = vpop.f32.mrb[0].mxu0
    %1261 = vdwg.mxu0
    %1262 = vmatprep.subr.bf16.mxu0 %v907
    %1263 = vmatpush1.bf16.msra.mxu0 %v906
    %1264 = vmatprep.subr.bf16.mxu0 %v909
    %1265 = vmatpush1.bf16.msra.mxu0 %v908
    %1266 = vmatprep.subr.bf16.mxu0 %v911
    %1267 = vmatpush1.bf16.msra.mxu0 %v910
    %1268 = vmatprep.subr.bf16.mxu0 %v913
    %1269 = vmatpush1.bf16.msra.mxu0 %v912
    %1270 = vmatprep.subr.bf16.mxu0 %v915
    %1271 = vmatpush1.bf16.msra.mxu0 %v914
    %1272 = vmatprep.subr.bf16.mxu0 %v917
    %1273 = vmatpush1.bf16.msra.mxu0 %v916
    %1274 = vmatprep.subr.bf16.mxu0 %v919
    %1275 = vmatpush1.bf16.msra.mxu0 %v918
    %1276 = vmatprep.subr.bf16.mxu0 %v921
    %1277 = vmatpush1.bf16.msra.mxu0 %v920
    %1278 = vmatprep.subr.bf16.mxu0 %v923
    %1279 = vmatpush1.bf16.msra.mxu0 %v922
    %1280 = vmatprep.subr.bf16.mxu0 %v925
    %1281 = vmatpush1.bf16.msra.mxu0 %v924
    %1282 = vmatprep.subr.bf16.mxu0 %v927
    %1283 = vmatpush1.bf16.msra.mxu0 %v926
    %1284 = vmatprep.subr.bf16.mxu0 %v929
    %1285 = vmatpush1.bf16.msra.mxu0 %v928
    %1286 = vmatprep.subr.bf16.mxu0 %v931
    %1287 = vmatpush1.bf16.msra.mxu0 %v930
    %1288 = vmatprep.subr.bf16.mxu0 %v933
    %1289 = vmatpush1.bf16.msra.mxu0 %v932
    %1290 = vmatprep.subr.bf16.mxu0 %v935
    %1291 = vmatpush1.bf16.msra.mxu0 %v934
    %1292 = vmatprep.subr.bf16.mxu0 %v937
    %1293 = vmatpush1.bf16.msra.mxu0 %v936
    %1294 = vmatprep.mubr.bf16.mxu0 %v287
    %1295 = vmatmul.mubr.bf16.gmra.mrb[0].mxu0 %v286
    %v1296 = vpop.f32.mrb[0].mxu0
    %v1297 = vadd.f32 %v1256, %v1296
    %v1298 = vpop.f32.mrb[0].mxu0
    %v1299 = vadd.f32 %v1258, %v1298
    %v1300 = vpop.f32.mrb[0].mxu0
    %v1301 = vpop.f32.mrb[0].mxu0
    %1302 = vdwg.mxu0
    %vm1303 = vcmp.ge.f32.partialorder %v1297, 0.0
    %vm1304 = vcmp.ge.f32.partialorder %v1299, 0.0
    %v1305 = vmul.f32 %v1297, 0.1
    %v1306 = vmul.f32 %v1299, 0.1
    %v1307 = vsel %vm1303, %v1297, %v1305
    %v1308 = vsel %vm1304, %v1299, %v1306
    %v1309 = vlaneseq
    %v1310 = vshrl.u32 %v1309, 7
    %v1311 = vlaneseq
    %v1312 = vand.u32 %v1311, 127
    %v1313 = vadd.s32 %v1312, 128
    %s1314 = smul.u32 %s85, 2654435769
    %s1315 = smul.u32 0, 668265583
    %s1316 = sadd.s32 %s1314, %s1315
    %s1317 = sadd.s32 %s1316, 374761393
    %v1318 = vmul.u32 %v1310, 2246822507
    %v1319 = vstv %s1317
    %v1320 = vadd.s32 %v1319, %v1318
    %v1321 = vmul.u32 %v1312, 3266489909
    %v1322 = vmul.u32 %v1313, 3266489909
    %v1323 = vadd.s32 %v1320, %v1321
    %v1324 = vadd.s32 %v1320, %v1322
    %v1325 = vshra.s32 %v1323, 16
    %v1326 = vshra.s32 %v1324, 16
    %v1327 = vand.u32 %v1325, 65535
    %v1328 = vand.u32 %v1326, 65535
    %v1329 = vxor.u32 %v1323, %v1327
    %v1330 = vxor.u32 %v1324, %v1328
    %v1331 = vmul.u32 %v1329, 2246822507
    %v1332 = vmul.u32 %v1330, 2246822507
    %v1333 = vshra.s32 %v1331, 13
    %v1334 = vshra.s32 %v1332, 13
    %v1335 = vand.u32 %v1333, 524287
    %v1336 = vand.u32 %v1334, 524287
    %v1337 = vxor.u32 %v1331, %v1335
    %v1338 = vxor.u32 %v1332, %v1336
    %v1339 = vmul.u32 %v1337, 3266489909
    %v1340 = vmul.u32 %v1338, 3266489909
    %v1341 = vshra.s32 %v1339, 16
    %v1342 = vshra.s32 %v1340, 16
    %v1343 = vand.u32 %v1341, 65535
    %v1344 = vand.u32 %v1342, 65535
    %v1345 = vxor.u32 %v1339, %v1343
    %v1346 = vxor.u32 %v1340, %v1344
    %v1347 = vand.u32 %v1345, 2147483647
    %v1348 = vand.u32 %v1346, 2147483647
    %vm1349 = vcmp.ge.s32.totalorder %v1347, 644245094
    %vm1350 = vcmp.ge.s32.totalorder %v1348, 644245094
    %v1351 = vmul.f32 %v1307, 1.4285715
    %v1352 = vmul.f32 %v1308, 1.4285715
    %v1353 = vsel %vm1349, %v1351, 0.0
    %v1354 = vsel %vm1350, %v1352, 0.0
    %v1355 = vpack.c.bf16 %v1353, %v1353
    %v1356 = vpack.c.bf16 %v1354, %v1354
    %v1357 = vld [vmem:[#allocation8] sm:$0xf]
    %v1358 = vld [vmem:[#allocation8 + $0x4] sm:$0xf]
    %v1359 = vld [vmem:[#allocation8 + $0x8] sm:$0xf]
    %v1360 = vld [vmem:[#allocation8 + $0xc] sm:$0xf]
    %v1361 = vld [vmem:[#allocation8 + $0x10] sm:$0xf]
    %v1362 = vld [vmem:[#allocation8 + $0x14] sm:$0xf]
    %v1363 = vld [vmem:[#allocation8 + $0x18] sm:$0xf]
    %v1364 = vld [vmem:[#allocation8 + $0x1c] sm:$0xf]
    %v1365 = vld [vmem:[#allocation8 + $0x20] sm:$0xf]
    %v1366 = vld [vmem:[#allocation8 + $0x24] sm:$0xf]
    %v1367 = vld [vmem:[#allocation8 + $0x28] sm:$0xf]
    %v1368 = vld [vmem:[#allocation8 + $0x2c] sm:$0xf]
    %v1369 = vld [vmem:[#allocation8 + $0x30] sm:$0xf]
    %v1370 = vld [vmem:[#allocation8 + $0x34] sm:$0xf]
    %v1371 = vld [vmem:[#allocation8 + $0x38] sm:$0xf]
    %v1372 = vld [vmem:[#allocation8 + $0x3c] sm:$0xf]
    %v1373 = vld [vmem:[#allocation8 + $0x40] sm:$0xf]
    %v1374 = vld [vmem:[#allocation8 + $0x44] sm:$0xf]
    %v1375 = vld [vmem:[#allocation8 + $0x48] sm:$0xf]
    %v1376 = vld [vmem:[#allocation8 + $0x4c] sm:$0xf]
    %v1377 = vld [vmem:[#allocation8 + $0x50] sm:$0xf]
    %v1378 = vld [vmem:[#allocation8 + $0x54] sm:$0xf]
    %v1379 = vld [vmem:[#allocation8 + $0x58] sm:$0xf]
    %v1380 = vld [vmem:[#allocation8 + $0x5c] sm:$0xf]
    %v1381 = vld [vmem:[#allocation8 + $0x60] sm:$0xf]
    %v1382 = vld [vmem:[#allocation8 + $0x64] sm:$0xf]
    %v1383 = vld [vmem:[#allocation8 + $0x68] sm:$0xf]
    %v1384 = vld [vmem:[#allocation8 + $0x6c] sm:$0xf]
    %v1385 = vld [vmem:[#allocation8 + $0x70] sm:$0xf]
    %v1386 = vld [vmem:[#allocation8 + $0x74] sm:$0xf]
    %v1387 = vld [vmem:[#allocation8 + $0x78] sm:$0xf]
    %v1388 = vld [vmem:[#allocation8 + $0x7c] sm:$0xf]
    %v1389 = vld [vmem:[%s5] sm:$0x1]
    %v1391 = vlaneseq
    %v1392 = vshrl.u32 %v1391, 7
    %v1393 = vsub.s32 0, %v1392
    %v1394 = vrot.slane %v1389, %v1393
    %v1428 = vunpack.c.l.b16 %v1357
    %v1429 = vunpack.c.l.b16 %v1358
    %v1430 = vunpack.c.l.b16 %v1359
    %v1431 = vunpack.c.l.b16 %v1360
    %v1432 = vunpack.c.l.b16 %v1361
    %v1433 = vunpack.c.l.b16 %v1362
    %v1434 = vunpack.c.l.b16 %v1363
    %v1435 = vunpack.c.l.b16 %v1364
    %v1436 = vunpack.c.l.b16 %v1365
    %v1437 = vunpack.c.l.b16 %v1366
    %v1438 = vunpack.c.l.b16 %v1367
    %v1439 = vunpack.c.l.b16 %v1368
    %v1440 = vunpack.c.l.b16 %v1369
    %v1441 = vunpack.c.l.b16 %v1370
    %v1442 = vunpack.c.l.b16 %v1371
    %v1443 = vunpack.c.l.b16 %v1372
    %v1444 = vunpack.c.l.b16 %v1373
    %v1445 = vunpack.c.l.b16 %v1374
    %v1446 = vunpack.c.l.b16 %v1375
    %v1447 = vunpack.c.l.b16 %v1376
    %v1448 = vunpack.c.l.b16 %v1377
    %v1449 = vunpack.c.l.b16 %v1378
    %v1450 = vunpack.c.l.b16 %v1379
    %v1451 = vunpack.c.l.b16 %v1380
    %v1452 = vunpack.c.l.b16 %v1381
    %v1453 = vunpack.c.l.b16 %v1382
    %v1454 = vunpack.c.l.b16 %v1383
    %v1455 = vunpack.c.l.b16 %v1384
    %v1456 = vunpack.c.l.b16 %v1385
    %v1457 = vunpack.c.l.b16 %v1386
    %v1458 = vunpack.c.l.b16 %v1387
    %v1459 = vunpack.c.l.b16 %v1388
    %v1460 = vpack.c.b16 %v1429, %v1428
    %v1461 = vpack.c.b16 %v1431, %v1430
    %v1462 = vpack.c.b16 %v1433, %v1432
    %v1463 = vpack.c.b16 %v1435, %v1434
    %v1464 = vpack.c.b16 %v1437, %v1436
    %v1465 = vpack.c.b16 %v1439, %v1438
    %v1466 = vpack.c.b16 %v1441, %v1440
    %v1467 = vpack.c.b16 %v1443, %v1442
    %v1468 = vpack.c.b16 %v1445, %v1444
    %v1469 = vpack.c.b16 %v1447, %v1446
    %v1470 = vpack.c.b16 %v1449, %v1448
    %v1471 = vpack.c.b16 %v1451, %v1450
    %v1472 = vpack.c.b16 %v1453, %v1452
    %v1473 = vpack.c.b16 %v1455, %v1454
    %v1474 = vpack.c.b16 %v1457, %v1456
    %v1475 = vpack.c.b16 %v1459, %v1458
    %1492 = vmatprep.subr.bf16.mxu0 0
    %1493 = vmatpush1.bf16.msra.mxu0 %v1460
    %1494 = vmatprep.subr.bf16.mxu0 0
    %1495 = vmatpush1.bf16.msra.mxu0 %v1461
    %1496 = vmatprep.subr.bf16.mxu0 0
    %1497 = vmatpush1.bf16.msra.mxu0 %v1462
    %1498 = vmatprep.subr.bf16.mxu0 0
    %1499 = vmatpush1.bf16.msra.mxu0 %v1463
    %1500 = vmatprep.subr.bf16.mxu0 0
    %1501 = vmatpush1.bf16.msra.mxu0 %v1464
    %1502 = vmatprep.subr.bf16.mxu0 0
    %1503 = vmatpush1.bf16.msra.mxu0 %v1465
    %1504 = vmatprep.subr.bf16.mxu0 0
    %1505 = vmatpush1.bf16.msra.mxu0 %v1466
    %1506 = vmatprep.subr.bf16.mxu0 0
    %1507 = vmatpush1.bf16.msra.mxu0 %v1467
    %1508 = vmatprep.subr.bf16.mxu0 0
    %1509 = vmatpush1.bf16.msra.mxu0 %v1468
    %1510 = vmatprep.subr.bf16.mxu0 0
    %1511 = vmatpush1.bf16.msra.mxu0 %v1469
    %1512 = vmatprep.subr.bf16.mxu0 0
    %1513 = vmatpush1.bf16.msra.mxu0 %v1470
    %1514 = vmatprep.subr.bf16.mxu0 0
    %1515 = vmatpush1.bf16.msra.mxu0 %v1471
    %1516 = vmatprep.subr.bf16.mxu0 0
    %1517 = vmatpush1.bf16.msra.mxu0 %v1472
    %1518 = vmatprep.subr.bf16.mxu0 0
    %1519 = vmatpush1.bf16.msra.mxu0 %v1473
    %1520 = vmatprep.subr.bf16.mxu0 0
    %1521 = vmatpush1.bf16.msra.mxu0 %v1474
    %1522 = vmatprep.subr.bf16.mxu0 0
    %1523 = vmatpush1.bf16.msra.mxu0 %v1475
    %1524 = vmatprep.mubr.bf16.mxu0 %v1356
    %1525 = vmatmul.mubr.bf16.gmra.mrb[0].mxu0 %v1355
    %v1526 = vpop.f32.mrb[0].mxu0
    %v1527 = vadd.f32 %v1394, %v1526
    %v1528 = vpop.f32.mrb[0].mxu0
    %v1529 = vpop.f32.mrb[0].mxu0
    %v1530 = vpop.f32.mrb[0].mxu0
    %1531 = vdwg.mxu0
    %vm1532 = vcmp.ge.f32.partialorder %v1527, 0.0
    %v1533 = vmul.f32 %v1527, 0.1
    %v1534 = vsel %vm1532, %v1527, %v1533
    %s1535 = sadd.s32 %s1316, 749522786
    %v1536 = vstv %s1535
    %v1537 = vadd.s32 %v1536, %v1318
    %v1538 = vadd.s32 %v1537, %v1321
    %v1539 = vshra.s32 %v1538, 16
    %v1540 = vand.u32 %v1539, 65535
    %v1541 = vxor.u32 %v1538, %v1540
    %v1542 = vmul.u32 %v1541, 2246822507
    %v1543 = vshra.s32 %v1542, 13
    %v1544 = vand.u32 %v1543, 524287
    %v1545 = vxor.u32 %v1542, %v1544
    %v1546 = vmul.u32 %v1545, 3266489909
    %v1547 = vshra.s32 %v1546, 16
    %v1548 = vand.u32 %v1547, 65535
    %v1549 = vxor.u32 %v1546, %v1548
    %v1550 = vand.u32 %v1549, 2147483647
    %vm1551 = vcmp.ge.s32.totalorder %v1550, 644245094
    %v1552 = vmul.f32 %v1534, 1.4285715
    %v1553 = vsel %vm1551, %v1552, 0.0
    %v1554 = vpack.c.bf16 %v1553, %v1553
    %v1555 = vld [vmem:[#allocation9] sm:$0xf]
    %v1556 = vld [vmem:[#allocation9 + $0x4] sm:$0xf]
    %v1557 = vld [vmem:[#allocation9 + $0x8] sm:$0xf]
    %v1558 = vld [vmem:[#allocation9 + $0xc] sm:$0xf]
    %v1559 = vld [vmem:[#allocation9 + $0x10] sm:$0xf]
    %v1560 = vld [vmem:[#allocation9 + $0x14] sm:$0xf]
    %v1561 = vld [vmem:[#allocation9 + $0x18] sm:$0xf]
    %v1562 = vld [vmem:[#allocation9 + $0x1c] sm:$0xf]
    %v1563 = vld [vmem:[#allocation9 + $0x20] sm:$0xf]
    %v1564 = vld [vmem:[#allocation9 + $0x24] sm:$0xf]
    %v1565 = vld [vmem:[#allocation9 + $0x28] sm:$0xf]
    %v1566 = vld [vmem:[#allocation9 + $0x2c] sm:$0xf]
    %v1567 = vld [vmem:[#allocation9 + $0x30] sm:$0xf]
    %v1568 = vld [vmem:[#allocation9 + $0x34] sm:$0xf]
    %v1569 = vld [vmem:[#allocation9 + $0x38] sm:$0xf]
    %v1570 = vld [vmem:[#allocation9 + $0x3c] sm:$0xf]
    %v1571 = vld [vmem:[%s7] sm:$0x1]
    %v1573 = vlaneseq
    %v1574 = vshrl.u32 %v1573, 7
    %v1575 = vsub.s32 0, %v1574
    %v1576 = vrot.slane %v1571, %v1575
    %v1594 = vunpack.c.l.b16 %v1555
    %v1595 = vunpack.c.l.b16 %v1556
    %v1596 = vunpack.c.l.b16 %v1557
    %v1597 = vunpack.c.l.b16 %v1558
    %v1598 = vunpack.c.l.b16 %v1559
    %v1599 = vunpack.c.l.b16 %v1560
    %v1600 = vunpack.c.l.b16 %v1561
    %v1601 = vunpack.c.l.b16 %v1562
    %v1602 = vunpack.c.l.b16 %v1563
    %v1603 = vunpack.c.l.b16 %v1564
    %v1604 = vunpack.c.l.b16 %v1565
    %v1605 = vunpack.c.l.b16 %v1566
    %v1606 = vunpack.c.l.b16 %v1567
    %v1607 = vunpack.c.l.b16 %v1568
    %v1608 = vunpack.c.l.b16 %v1569
    %v1609 = vunpack.c.l.b16 %v1570
    %v1610 = vpack.c.b16 %v1595, %v1594
    %v1611 = vpack.c.b16 %v1597, %v1596
    %v1612 = vpack.c.b16 %v1599, %v1598
    %v1613 = vpack.c.b16 %v1601, %v1600
    %v1614 = vpack.c.b16 %v1603, %v1602
    %v1615 = vpack.c.b16 %v1605, %v1604
    %v1616 = vpack.c.b16 %v1607, %v1606
    %v1617 = vpack.c.b16 %v1609, %v1608
    %1626 = vmatprep.subr.bf16.mxu0 0
    %1627 = vmatpush1.bf16.msra.mxu0 %v1610
    %1628 = vmatprep.subr.bf16.mxu0 0
    %1629 = vmatpush1.bf16.msra.mxu0 %v1611
    %1630 = vmatprep.subr.bf16.mxu0 0
    %1631 = vmatpush1.bf16.msra.mxu0 %v1612
    %1632 = vmatprep.subr.bf16.mxu0 0
    %1633 = vmatpush1.bf16.msra.mxu0 %v1613
    %1634 = vmatprep.subr.bf16.mxu0 0
    %1635 = vmatpush1.bf16.msra.mxu0 %v1614
    %1636 = vmatprep.subr.bf16.mxu0 0
    %1637 = vmatpush1.bf16.msra.mxu0 %v1615
    %1638 = vmatprep.subr.bf16.mxu0 0
    %1639 = vmatpush1.bf16.msra.mxu0 %v1616
    %1640 = vmatprep.subr.bf16.mxu0 0
    %1641 = vmatpush1.bf16.msra.mxu0 %v1617
    %1642 = vmatprep.subr.bf16.mxu0 0
    %1643 = vmatpush1.bf16.msra.mxu0 0
    %1644 = vmatprep.subr.bf16.mxu0 0
    %1645 = vmatpush1.bf16.msra.mxu0 0
    %1646 = vmatprep.subr.bf16.mxu0 0
    %1647 = vmatpush1.bf16.msra.mxu0 0
    %1648 = vmatprep.subr.bf16.mxu0 0
    %1649 = vmatpush1.bf16.msra.mxu0 0
    %1650 = vmatprep.subr.bf16.mxu0 0
    %1651 = vmatpush1.bf16.msra.mxu0 0
    %1652 = vmatprep.subr.bf16.mxu0 0
    %1653 = vmatpush1.bf16.msra.mxu0 0
    %1654 = vmatprep.subr.bf16.mxu0 0
    %1655 = vmatpush1.bf16.msra.mxu0 0
    %1656 = vmatprep.subr.bf16.mxu0 0
    %1657 = vmatpush1.bf16.msra.mxu0 0
    %1658 = vmatprep.mubr.bf16.mxu0 0
    %1659 = vmatmul.mubr.bf16.gmra.mrb[0].mxu0 %v1554
    %v1660 = vpop.f32.mrb[0].mxu0
    %v1661 = vadd.f32 %v1576, %v1660
    %v1662 = vpop.f32.mrb[0].mxu0
    %v1663 = vpop.f32.mrb[0].mxu0
    %v1664 = vpop.f32.mrb[0].mxu0
    %1665 = vdwg.mxu0
    %v1666 = vtanh.pop %v1661
    %1667 = vst [vmem:[#allocation11] sm:$0xff] %v1666
    // Predicated region
    $region50: #{tpu_custom_call.1} parent=1 // pred_check
      _
    $region51: #{tpu_custom_call.1} parent=1 // pred_check_branch
      %1669 = sbr.rel (0) target = $region53
    $region52: #{tpu_custom_call.1} parent=1 // pred_region
      %s1671 = ssub.s32 128, 128
      %1672 = vsyncadd [#allocation5], %s1671
      %s1674 = sshll.u32 [#allocation11], 4
      %s1675 = int_to_ptr.vmem [resolvable:$true] %s1674
      %1677 = dma.vmem_to_hbm [thread:$0]  %s1675, 128, %s8, [#allocation5]
    $region53: #{tpu_custom_call.1} parent=1 // pred_fallthru
      _
    // Predicated region
    $region54: #{tpu_custom_call.1} parent=1 // pred_check
      _
    $region55: #{tpu_custom_call.1} parent=1 // pred_check_branch
      %1679 = sbr.rel (0) target = $region57
    $region56: #{tpu_custom_call.1} parent=1 // pred_region
      %1680 = dma.done [#allocation5], 128
    $region57: #{tpu_custom_call.1} parent=1 // pred_fallthru
      _
    %1681 = vsyncpa [#allocation4], 1
    %1682 = vsyncpa [#allocation7], 1
    %1683 = vsyncpa [#allocation10], 1
    %1684 = vsyncpa [#allocation5], 1

</llo_original>
